<compile_context>
chip_gen: v6e
topology: v6e:2x2x1
jax: 0.10.0
libtpu: 0.0.40
codegen_flags: <defaults>
</compile_context>

<pallas_src>
import math
import jax
import jax.numpy as jnp
from jax import lax
from jax.experimental import pallas as pl
from jax.experimental.pallas import tpu as pltpu

# problem sizes (small, consistent with the module's forward)
B, S, D = 2, 8, 32          # batch, sequence, model dim ("size")
H = 4                       # attention heads
DK = D // H                 # per-head dim
DFF = 64                    # feed-forward hidden dim
EPS = 1e-6                  # LayerNorm eps (added to std, matching the reference)


def encoder_layer_kernel(x_ref, maskb_ref, ln_ref, bias_ref,
                         wqkv_ref, wo_ref, w1_ref, w2_ref,
                         o_ref):
    x = x_ref[...]                 # (B*S, D)
    mask_bias = maskb_ref[...]     # (B, S) additive: 0 = keep, -1e9 = masked
    ln = ln_ref[...]               # (4, D): a1, b1, a2, b2
    bias = bias_ref[...]           # (4, 3D): [bq|bk|bv], bo, b_ff1, b_ff2 (zero padded)

    a1, b1 = ln[0:1, :], ln[1:2, :]
    a2, b2 = ln[2:3, :], ln[3:4, :]
    bqkv = bias[0:1, :]
    bo = bias[1:2, :D]
    b1f = bias[2:3, :DFF]
    b2f = bias[3:4, :D]

    def layer_norm(v, a, b):
        mean = jnp.mean(v, axis=-1, keepdims=True)
        # torch.std defaults to the unbiased estimator (N-1); eps is added to std.
        var = jnp.sum((v - mean) ** 2, axis=-1, keepdims=True) / (D - 1)
        std = jnp.sqrt(var)
        return a * (v - mean) / (std + EPS) + b

    # --- sublayer 0: pre-norm self-attention + residual (dropout = identity) ---
    nx = layer_norm(x, a1, b1)                                                     # (B*S, D)
    qkv = jnp.dot(nx, wqkv_ref[...], preferred_element_type=jnp.float32) + bqkv    # (B*S, 3D)
    q = qkv[:, 0:D]
    k = qkv[:, D:2 * D]
    v = qkv[:, 2 * D:3 * D]

    scale = jnp.float32(1.0 / math.sqrt(DK))
    contract_last = (((1,), (1,)), ((), ()))   # q @ k^T without an explicit transpose

    batch_rows = []
    for b in range(B):                          # static unroll, B = 2
        r = b * S
        qb = q[r:r + S, :]
        kb = k[r:r + S, :]
        vb = v[r:r + S, :]
        bias_b = mask_bias[b:b + 1, :]          # (1, S), broadcasts over query rows
        head_outs = []
        for h in range(H):                      # static unroll, H = 4
            c = h * DK
            qh = qb[:, c:c + DK]                # (S, DK)
            kh = kb[:, c:c + DK]
            vh = vb[:, c:c + DK]
            scores = lax.dot_general(qh, kh, contract_last,
                                     preferred_element_type=jnp.float32) * scale
            scores = scores + bias_b            # additive mask bias (hoisted, no where)
            m = jnp.max(scores, axis=-1, keepdims=True)
            p = jnp.exp(scores - m)
            denom = jnp.sum(p, axis=-1, keepdims=True)
            p = p * pl.reciprocal(denom, approx=True)
            head_outs.append(jnp.dot(p, vh, preferred_element_type=jnp.float32))   # (S, DK)
        batch_rows.append(jnp.concatenate(head_outs, axis=-1))                     # (S, D)
    attn = jnp.concatenate(batch_rows, axis=0)                                     # (B*S, D)
    attn = jnp.dot(attn, wo_ref[...], preferred_element_type=jnp.float32) + bo
    x1 = x + attn

    # --- sublayer 1: pre-norm feed-forward + residual (dropout = identity) ---
    nx2 = layer_norm(x1, a2, b2)
    h1 = jnp.dot(nx2, w1_ref[...], preferred_element_type=jnp.float32) + b1f
    h1 = jnp.maximum(h1, 0.0)                                                      # ReLU
    ff = jnp.dot(h1, w2_ref[...], preferred_element_type=jnp.float32) + b2f
    o_ref[...] = x1 + ff


def encoder_layer(x, mask, params):
    (a1, b1, a2, b2, wq, bq, wk, bk, wv, bv, wo, bo, w1, bb1, w2, bb2) = params

    # ---- wrapper-side parameter packing (cheap XLA concatenations, fewer kernel DMAs) ----
    wqkv = jnp.concatenate([wq, wk, wv], axis=1)                 # (D, 3D)
    ln_pack = jnp.concatenate([a1, b1, a2, b2], axis=0)          # (4, D)

    def pad_cols(v, width):
        return jnp.pad(v, ((0, 0), (0, width - v.shape[1])))

    bias_pack = jnp.concatenate([
        jnp.concatenate([bq, bk, bv], axis=1),                   # (1, 3D)
        pad_cols(bo, 3 * D),
        pad_cols(bb1, 3 * D),
        pad_cols(bb2, 3 * D),
    ], axis=0).astype(jnp.float32)                               # (4, 3D)

    # batch folded into sublanes; mask pre-baked as additive bias
    x_flat = x.reshape(B * S, D)
    mask_bias = ((mask.reshape(B, S) - 1.0) * 1e9).astype(jnp.float32)

    in_arrays = (x_flat, mask_bias, ln_pack, bias_pack, wqkv, wo, w1, w2)

    def full_spec(arr):
        nd = arr.ndim
        return pl.BlockSpec(arr.shape, lambda i, _nd=nd: (0,) * _nd)

    out_flat = pl.pallas_call(
        encoder_layer_kernel,
        out_shape=jax.ShapeDtypeStruct((B * S, D), jnp.float32),
        grid_spec=pltpu.PrefetchScalarGridSpec(
            num_scalar_prefetch=0,
            grid=(1,),                                            # single step: tiny problem is latency-bound
            in_specs=[full_spec(a) for a in in_arrays],
            out_specs=pl.BlockSpec((B * S, D), lambda i: (0, 0)),
        ),
        compiler_params=pltpu.CompilerParams(dimension_semantics=("arbitrary",)),
    )(*in_arrays)
    return out_flat.reshape(B, S, D)


def encoder_layer_ref(x, mask, params):
    """Pure-JAX reference mirroring the torch module (for a sanity check)."""
    (a1, b1, a2, b2, wq, bq, wk, bk, wv, bv, wo, bo, w1, bb1, w2, bb2) = params

    def ln(v, a, b):
        mean = jnp.mean(v, axis=-1, keepdims=True)
        var = jnp.sum((v - mean) ** 2, axis=-1, keepdims=True) / (D - 1)
        return a * (v - mean) / (jnp.sqrt(var) + EPS) + b

    nx = ln(x, a1, b1)
    q = (nx @ wq + bq).reshape(B, S, H, DK).transpose(0, 2, 1, 3)
    k = (nx @ wk + bk).reshape(B, S, H, DK).transpose(0, 2, 1, 3)
    v = (nx @ wv + bv).reshape(B, S, H, DK).transpose(0, 2, 1, 3)
    scores = (q @ jnp.swapaxes(k, -1, -2)) / math.sqrt(DK)        # (B,H,S,S)
    scores = jnp.where(mask[:, None, :, :] == 0, -1e9, scores)
    p = jax.nn.softmax(scores, axis=-1)
    att = (p @ v).transpose(0, 2, 1, 3).reshape(B, S, D)
    x1 = x + (att @ wo + bo)
    nx2 = ln(x1, a2, b2)
    ff = jnp.maximum(nx2 @ w1 + bb1, 0.0) @ w2 + bb2
    return x1 + ff


if __name__ == "__main__":
    key = jax.random.PRNGKey(0)
    keys = jax.random.split(key, 12)

    # inputs
    x = jax.random.normal(keys[0], (B, S, D), dtype=jnp.float32)
    mask = jnp.ones((B, 1, S), dtype=jnp.float32)
    mask = mask.at[1, 0, S - 2:].set(0.0)   # mask the last 2 key positions of batch 1

    # parameters (deterministic synthetic init)
    scale_attn = 1.0 / math.sqrt(D)
    scale_ff1 = 1.0 / math.sqrt(D)
    scale_ff2 = 1.0 / math.sqrt(DFF)
    params = (
        jnp.ones((1, D), jnp.float32),                                   # LN0 gain  (a_2)
        jnp.zeros((1, D), jnp.float32),                                  # LN0 bias  (b_2)
        jnp.ones((1, D), jnp.float32),                                   # LN1 gain
        jnp.zeros((1, D), jnp.float32),                                  # LN1 bias
        jax.random.normal(keys[1], (D, D), jnp.float32) * scale_attn,    # Wq
        jnp.zeros((1, D), jnp.float32),                                  # bq
        jax.random.normal(keys[2], (D, D), jnp.float32) * scale_attn,    # Wk
        jnp.zeros((1, D), jnp.float32),                                  # bk
        jax.random.normal(keys[3], (D, D), jnp.float32) * scale_attn,    # Wv
        jnp.zeros((1, D), jnp.float32),                                  # bv
        jax.random.normal(keys[4], (D, D), jnp.float32) * scale_attn,    # Wo
        jnp.zeros((1, D), jnp.float32),                                  # bo
        jax.random.normal(keys[5], (D, DFF), jnp.float32) * scale_ff1,   # FFN W1
        jnp.zeros((1, DFF), jnp.float32),                                # FFN b1
        jax.random.normal(keys[6], (DFF, D), jnp.float32) * scale_ff2,   # FFN W2
        jnp.zeros((1, D), jnp.float32),                                  # FFN b2
    )

    out = encoder_layer(x, mask, params)
    jax.block_until_ready(out)
    assert out.shape == (B, S, D) and out.dtype == jnp.float32

    ref = encoder_layer_ref(x, mask, params)
    # approx reciprocal in the softmax denominator => loose-but-safe tolerance
    assert jnp.allclose(out, ref, atol=1e-2, rtol=1e-2), float(jnp.max(jnp.abs(out - ref)))

    # TODO(synk): dropout layers are treated as identity (inference mode); no RNG dropout in-kernel.
    print("KERNEL_OK")
</pallas_src>

<mosaic_0001>
module attributes {stable_mosaic.version = 11 : i64} {
  func.func @encoder_layer_kernel(%arg0: i32, %arg1: memref<16x32xf32, #tpu.memory_space<vmem>>, %arg2: memref<2x8xf32, #tpu.memory_space<vmem>>, %arg3: memref<4x32xf32, #tpu.memory_space<vmem>>, %arg4: memref<4x96xf32, #tpu.memory_space<vmem>>, %arg5: memref<32x96xf32, #tpu.memory_space<vmem>>, %arg6: memref<32x32xf32, #tpu.memory_space<vmem>>, %arg7: memref<32x64xf32, #tpu.memory_space<vmem>>, %arg8: memref<64x32xf32, #tpu.memory_space<vmem>>, %arg9: memref<16x32xf32, #tpu.memory_space<vmem>>) attributes {dimension_semantics = [#tpu.dimension_semantics<arbitrary>], iteration_bounds = array<i64: 1>, scalar_prefetch = 0 : i64, scratch_operands = 0 : i64, tpu.core_type = #tpu.core_type<tc>, window_params = [{pipeline_mode = #tpu.pipeline_mode<synchronous>, transform_indices = @transform_0, window_bounds = array<i64: 16, 32>}, {pipeline_mode = #tpu.pipeline_mode<synchronous>, transform_indices = @transform_1, window_bounds = array<i64: 2, 8>}, {pipeline_mode = #tpu.pipeline_mode<synchronous>, transform_indices = @transform_2, window_bounds = array<i64: 4, 32>}, {pipeline_mode = #tpu.pipeline_mode<synchronous>, transform_indices = @transform_3, window_bounds = array<i64: 4, 96>}, {pipeline_mode = #tpu.pipeline_mode<synchronous>, transform_indices = @transform_4, window_bounds = array<i64: 32, 96>}, {pipeline_mode = #tpu.pipeline_mode<synchronous>, transform_indices = @transform_5, window_bounds = array<i64: 32, 32>}, {pipeline_mode = #tpu.pipeline_mode<synchronous>, transform_indices = @transform_6, window_bounds = array<i64: 32, 64>}, {pipeline_mode = #tpu.pipeline_mode<synchronous>, transform_indices = @transform_7, window_bounds = array<i64: 64, 32>}, {pipeline_mode = #tpu.pipeline_mode<synchronous>, transform_indices = @transform_8, window_bounds = array<i64: 16, 32>}]} {
    %c0 = arith.constant 0 : index
    %c0_0 = arith.constant 0 : index
    %0 = vector.load %arg1[%c0, %c0_0] : memref<16x32xf32, #tpu.memory_space<vmem>>, vector<16x32xf32>
    %c0_1 = arith.constant 0 : index
    %c0_2 = arith.constant 0 : index
    %1 = vector.load %arg2[%c0_1, %c0_2] : memref<2x8xf32, #tpu.memory_space<vmem>>, vector<2x8xf32>
    %c0_3 = arith.constant 0 : index
    %c0_4 = arith.constant 0 : index
    %2 = vector.load %arg3[%c0_3, %c0_4] : memref<4x32xf32, #tpu.memory_space<vmem>>, vector<4x32xf32>
    %c0_5 = arith.constant 0 : index
    %c0_6 = arith.constant 0 : index
    %3 = vector.load %arg4[%c0_5, %c0_6] : memref<4x96xf32, #tpu.memory_space<vmem>>, vector<4x96xf32>
    %4 = vector.extract_strided_slice %2 {offsets = [0, 0], sizes = [1, 32], strides = [1, 1]} : vector<4x32xf32> to vector<1x32xf32>
    %5 = vector.extract_strided_slice %2 {offsets = [1, 0], sizes = [1, 32], strides = [1, 1]} : vector<4x32xf32> to vector<1x32xf32>
    %6 = vector.extract_strided_slice %2 {offsets = [2, 0], sizes = [1, 32], strides = [1, 1]} : vector<4x32xf32> to vector<1x32xf32>
    %7 = vector.extract_strided_slice %2 {offsets = [3, 0], sizes = [1, 32], strides = [1, 1]} : vector<4x32xf32> to vector<1x32xf32>
    %8 = vector.extract_strided_slice %3 {offsets = [0, 0], sizes = [1, 96], strides = [1, 1]} : vector<4x96xf32> to vector<1x96xf32>
    %9 = vector.extract_strided_slice %3 {offsets = [1, 0], sizes = [1, 32], strides = [1, 1]} : vector<4x96xf32> to vector<1x32xf32>
    %10 = vector.extract_strided_slice %3 {offsets = [2, 0], sizes = [1, 64], strides = [1, 1]} : vector<4x96xf32> to vector<1x64xf32>
    %11 = vector.extract_strided_slice %3 {offsets = [3, 0], sizes = [1, 32], strides = [1, 1]} : vector<4x96xf32> to vector<1x32xf32>
    %cst = arith.constant dense<0.000000e+00> : vector<16xf32>
    %12 = vector.multi_reduction <add>, %0, %cst [1] : vector<16x32xf32> to vector<16xf32>
    %13 = vector.shape_cast %12 : vector<16xf32> to vector<16x1xf32>
    %cst_7 = arith.constant 3.200000e+01 : f32
    %14 = vector.broadcast %cst_7 : f32 to vector<16x1xf32>
    %15 = arith.divf %13, %14 : vector<16x1xf32>
    %16 = vector.broadcast %15 : vector<16x1xf32> to vector<16x32xf32>
    %17 = arith.subf %0, %16 : vector<16x32xf32>
    %18 = arith.mulf %17, %17 : vector<16x32xf32>
    %cst_8 = arith.constant dense<0.000000e+00> : vector<16xf32>
    %19 = vector.multi_reduction <add>, %18, %cst_8 [1] : vector<16x32xf32> to vector<16xf32>
    %20 = vector.shape_cast %19 : vector<16xf32> to vector<16x1xf32>
    %cst_9 = arith.constant 3.100000e+01 : f32
    %21 = vector.broadcast %cst_9 : f32 to vector<16x1xf32>
    %22 = arith.divf %20, %21 : vector<16x1xf32>
    %23 = math.sqrt %22 : vector<16x1xf32>
    %24 = vector.broadcast %15 : vector<16x1xf32> to vector<16x32xf32>
    %25 = arith.subf %0, %24 : vector<16x32xf32>
    %26 = vector.broadcast %4 : vector<1x32xf32> to vector<16x32xf32>
    %27 = arith.mulf %26, %25 : vector<16x32xf32>
    %cst_10 = arith.constant 9.99999997E-7 : f32
    %28 = vector.broadcast %cst_10 : f32 to vector<16x1xf32>
    %29 = arith.addf %23, %28 : vector<16x1xf32>
    %30 = vector.broadcast %29 : vector<16x1xf32> to vector<16x32xf32>
    %31 = arith.divf %27, %30 : vector<16x32xf32>
    %32 = vector.broadcast %5 : vector<1x32xf32> to vector<16x32xf32>
    %33 = arith.addf %31, %32 : vector<16x32xf32>
    %c0_11 = arith.constant 0 : index
    %c0_12 = arith.constant 0 : index
    %34 = vector.load %arg5[%c0_11, %c0_12] : memref<32x96xf32, #tpu.memory_space<vmem>>, vector<32x96xf32>
    %cst_13 = arith.constant dense<0.000000e+00> : vector<16x96xf32>
    %35 = tpu.matmul %33, %34, %cst_13 {dimension_numbers = #tpu.dot_dimension_numbers<[1], [0], [0], [1], [0, 0, 1, 1], [], []>} : vector<16x32xf32>, vector<32x96xf32>, vector<16x96xf32> -> vector<16x96xf32>
    %36 = vector.broadcast %8 : vector<1x96xf32> to vector<16x96xf32>
    %37 = arith.addf %35, %36 : vector<16x96xf32>
    %38 = vector.extract_strided_slice %37 {offsets = [0, 0], sizes = [16, 32], strides = [1, 1]} : vector<16x96xf32> to vector<16x32xf32>
    %39 = vector.extract_strided_slice %37 {offsets = [0, 32], sizes = [16, 32], strides = [1, 1]} : vector<16x96xf32> to vector<16x32xf32>
    %40 = vector.extract_strided_slice %37 {offsets = [0, 64], sizes = [16, 32], strides = [1, 1]} : vector<16x96xf32> to vector<16x32xf32>
    %41 = vector.extract_strided_slice %38 {offsets = [0, 0], sizes = [8, 32], strides = [1, 1]} : vector<16x32xf32> to vector<8x32xf32>
    %42 = vector.extract_strided_slice %39 {offsets = [0, 0], sizes = [8, 32], strides = [1, 1]} : vector<16x32xf32> to vector<8x32xf32>
    %43 = vector.extract_strided_slice %40 {offsets = [0, 0], sizes = [8, 32], strides = [1, 1]} : vector<16x32xf32> to vector<8x32xf32>
    %44 = vector.extract_strided_slice %1 {offsets = [0, 0], sizes = [1, 8], strides = [1, 1]} : vector<2x8xf32> to vector<1x8xf32>
    %45 = vector.extract_strided_slice %41 {offsets = [0, 0], sizes = [8, 8], strides = [1, 1]} : vector<8x32xf32> to vector<8x8xf32>
    %46 = vector.extract_strided_slice %42 {offsets = [0, 0], sizes = [8, 8], strides = [1, 1]} : vector<8x32xf32> to vector<8x8xf32>
    %47 = vector.extract_strided_slice %43 {offsets = [0, 0], sizes = [8, 8], strides = [1, 1]} : vector<8x32xf32> to vector<8x8xf32>
    %cst_14 = arith.constant dense<0.000000e+00> : vector<8x8xf32>
    %48 = tpu.matmul %45, %46, %cst_14 {dimension_numbers = #tpu.dot_dimension_numbers<[1], [1], [0], [0], [0, 0, 1, 0], [], []>} : vector<8x8xf32>, vector<8x8xf32>, vector<8x8xf32> -> vector<8x8xf32>
    %cst_15 = arith.constant 0.353553385 : f32
    %49 = vector.broadcast %cst_15 : f32 to vector<8x8xf32>
    %50 = arith.mulf %48, %49 : vector<8x8xf32>
    %51 = vector.broadcast %44 : vector<1x8xf32> to vector<8x8xf32>
    %52 = arith.addf %50, %51 : vector<8x8xf32>
    %cst_16 = arith.constant dense<0xFF800000> : vector<8xf32>
    %53 = vector.multi_reduction <maximumf>, %52, %cst_16 [1] : vector<8x8xf32> to vector<8xf32>
    %54 = vector.shape_cast %53 : vector<8xf32> to vector<8x1xf32>
    %55 = vector.broadcast %54 : vector<8x1xf32> to vector<8x8xf32>
    %56 = arith.subf %52, %55 : vector<8x8xf32>
    %57 = math.exp %56 : vector<8x8xf32>
    %cst_17 = arith.constant dense<0.000000e+00> : vector<8xf32>
    %58 = vector.multi_reduction <add>, %57, %cst_17 [1] : vector<8x8xf32> to vector<8xf32>
    %59 = vector.shape_cast %58 : vector<8xf32> to vector<8x1xf32>
    %60 = tpu.reciprocal %59 {approx = true} : vector<8x1xf32> -> vector<8x1xf32>
    %61 = vector.broadcast %60 : vector<8x1xf32> to vector<8x8xf32>
    %62 = arith.mulf %57, %61 : vector<8x8xf32>
    %cst_18 = arith.constant dense<0.000000e+00> : vector<8x8xf32>
    %63 = tpu.matmul %62, %47, %cst_18 {dimension_numbers = #tpu.dot_dimension_numbers<[1], [0], [0], [1], [0, 0, 1, 1], [], []>} : vector<8x8xf32>, vector<8x8xf32>, vector<8x8xf32> -> vector<8x8xf32>
    %64 = vector.extract_strided_slice %41 {offsets = [0, 8], sizes = [8, 8], strides = [1, 1]} : vector<8x32xf32> to vector<8x8xf32>
    %65 = vector.extract_strided_slice %42 {offsets = [0, 8], sizes = [8, 8], strides = [1, 1]} : vector<8x32xf32> to vector<8x8xf32>
    %66 = vector.extract_strided_slice %43 {offsets = [0, 8], sizes = [8, 8], strides = [1, 1]} : vector<8x32xf32> to vector<8x8xf32>
    %cst_19 = arith.constant dense<0.000000e+00> : vector<8x8xf32>
    %67 = tpu.matmul %64, %65, %cst_19 {dimension_numbers = #tpu.dot_dimension_numbers<[1], [1], [0], [0], [0, 0, 1, 0], [], []>} : vector<8x8xf32>, vector<8x8xf32>, vector<8x8xf32> -> vector<8x8xf32>
    %cst_20 = arith.constant 0.353553385 : f32
    %68 = vector.broadcast %cst_20 : f32 to vector<8x8xf32>
    %69 = arith.mulf %67, %68 : vector<8x8xf32>
    %70 = vector.broadcast %44 : vector<1x8xf32> to vector<8x8xf32>
    %71 = arith.addf %69, %70 : vector<8x8xf32>
    %cst_21 = arith.constant dense<0xFF800000> : vector<8xf32>
    %72 = vector.multi_reduction <maximumf>, %71, %cst_21 [1] : vector<8x8xf32> to vector<8xf32>
    %73 = vector.shape_cast %72 : vector<8xf32> to vector<8x1xf32>
    %74 = vector.broadcast %73 : vector<8x1xf32> to vector<8x8xf32>
    %75 = arith.subf %71, %74 : vector<8x8xf32>
    %76 = math.exp %75 : vector<8x8xf32>
    %cst_22 = arith.constant dense<0.000000e+00> : vector<8xf32>
    %77 = vector.multi_reduction <add>, %76, %cst_22 [1] : vector<8x8xf32> to vector<8xf32>
    %78 = vector.shape_cast %77 : vector<8xf32> to vector<8x1xf32>
    %79 = tpu.reciprocal %78 {approx = true} : vector<8x1xf32> -> vector<8x1xf32>
    %80 = vector.broadcast %79 : vector<8x1xf32> to vector<8x8xf32>
    %81 = arith.mulf %76, %80 : vector<8x8xf32>
    %cst_23 = arith.constant dense<0.000000e+00> : vector<8x8xf32>
    %82 = tpu.matmul %81, %66, %cst_23 {dimension_numbers = #tpu.dot_dimension_numbers<[1], [0], [0], [1], [0, 0, 1, 1], [], []>} : vector<8x8xf32>, vector<8x8xf32>, vector<8x8xf32> -> vector<8x8xf32>
    %83 = vector.extract_strided_slice %41 {offsets = [0, 16], sizes = [8, 8], strides = [1, 1]} : vector<8x32xf32> to vector<8x8xf32>
    %84 = vector.extract_strided_slice %42 {offsets = [0, 16], sizes = [8, 8], strides = [1, 1]} : vector<8x32xf32> to vector<8x8xf32>
    %85 = vector.extract_strided_slice %43 {offsets = [0, 16], sizes = [8, 8], strides = [1, 1]} : vector<8x32xf32> to vector<8x8xf32>
    %cst_24 = arith.constant dense<0.000000e+00> : vector<8x8xf32>
    %86 = tpu.matmul %83, %84, %cst_24 {dimension_numbers = #tpu.dot_dimension_numbers<[1], [1], [0], [0], [0, 0, 1, 0], [], []>} : vector<8x8xf32>, vector<8x8xf32>, vector<8x8xf32> -> vector<8x8xf32>
    %cst_25 = arith.constant 0.353553385 : f32
    %87 = vector.broadcast %cst_25 : f32 to vector<8x8xf32>
    %88 = arith.mulf %86, %87 : vector<8x8xf32>
    %89 = vector.broadcast %44 : vector<1x8xf32> to vector<8x8xf32>
    %90 = arith.addf %88, %89 : vector<8x8xf32>
    %cst_26 = arith.constant dense<0xFF800000> : vector<8xf32>
    %91 = vector.multi_reduction <maximumf>, %90, %cst_26 [1] : vector<8x8xf32> to vector<8xf32>
    %92 = vector.shape_cast %91 : vector<8xf32> to vector<8x1xf32>
    %93 = vector.broadcast %92 : vector<8x1xf32> to vector<8x8xf32>
    %94 = arith.subf %90, %93 : vector<8x8xf32>
    %95 = math.exp %94 : vector<8x8xf32>
    %cst_27 = arith.constant dense<0.000000e+00> : vector<8xf32>
    %96 = vector.multi_reduction <add>, %95, %cst_27 [1] : vector<8x8xf32> to vector<8xf32>
    %97 = vector.shape_cast %96 : vector<8xf32> to vector<8x1xf32>
    %98 = tpu.reciprocal %97 {approx = true} : vector<8x1xf32> -> vector<8x1xf32>
    %99 = vector.broadcast %98 : vector<8x1xf32> to vector<8x8xf32>
    %100 = arith.mulf %95, %99 : vector<8x8xf32>
    %cst_28 = arith.constant dense<0.000000e+00> : vector<8x8xf32>
    %101 = tpu.matmul %100, %85, %cst_28 {dimension_numbers = #tpu.dot_dimension_numbers<[1], [0], [0], [1], [0, 0, 1, 1], [], []>} : vector<8x8xf32>, vector<8x8xf32>, vector<8x8xf32> -> vector<8x8xf32>
    %102 = vector.extract_strided_slice %41 {offsets = [0, 24], sizes = [8, 8], strides = [1, 1]} : vector<8x32xf32> to vector<8x8xf32>
    %103 = vector.extract_strided_slice %42 {offsets = [0, 24], sizes = [8, 8], strides = [1, 1]} : vector<8x32xf32> to vector<8x8xf32>
    %104 = vector.extract_strided_slice %43 {offsets = [0, 24], sizes = [8, 8], strides = [1, 1]} : vector<8x32xf32> to vector<8x8xf32>
    %cst_29 = arith.constant dense<0.000000e+00> : vector<8x8xf32>
    %105 = tpu.matmul %102, %103, %cst_29 {dimension_numbers = #tpu.dot_dimension_numbers<[1], [1], [0], [0], [0, 0, 1, 0], [], []>} : vector<8x8xf32>, vector<8x8xf32>, vector<8x8xf32> -> vector<8x8xf32>
    %cst_30 = arith.constant 0.353553385 : f32
    %106 = vector.broadcast %cst_30 : f32 to vector<8x8xf32>
    %107 = arith.mulf %105, %106 : vector<8x8xf32>
    %108 = vector.broadcast %44 : vector<1x8xf32> to vector<8x8xf32>
    %109 = arith.addf %107, %108 : vector<8x8xf32>
    %cst_31 = arith.constant dense<0xFF800000> : vector<8xf32>
    %110 = vector.multi_reduction <maximumf>, %109, %cst_31 [1] : vector<8x8xf32> to vector<8xf32>
    %111 = vector.shape_cast %110 : vector<8xf32> to vector<8x1xf32>
    %112 = vector.broadcast %111 : vector<8x1xf32> to vector<8x8xf32>
    %113 = arith.subf %109, %112 : vector<8x8xf32>
    %114 = math.exp %113 : vector<8x8xf32>
    %cst_32 = arith.constant dense<0.000000e+00> : vector<8xf32>
    %115 = vector.multi_reduction <add>, %114, %cst_32 [1] : vector<8x8xf32> to vector<8xf32>
    %116 = vector.shape_cast %115 : vector<8xf32> to vector<8x1xf32>
    %117 = tpu.reciprocal %116 {approx = true} : vector<8x1xf32> -> vector<8x1xf32>
    %118 = vector.broadcast %117 : vector<8x1xf32> to vector<8x8xf32>
    %119 = arith.mulf %114, %118 : vector<8x8xf32>
    %cst_33 = arith.constant dense<0.000000e+00> : vector<8x8xf32>
    %120 = tpu.matmul %119, %104, %cst_33 {dimension_numbers = #tpu.dot_dimension_numbers<[1], [0], [0], [1], [0, 0, 1, 1], [], []>} : vector<8x8xf32>, vector<8x8xf32>, vector<8x8xf32> -> vector<8x8xf32>
    %121 = tpu.concatenate %63, %82, %101, %120 in 1 : vector<8x8xf32>, vector<8x8xf32>, vector<8x8xf32>, vector<8x8xf32> -> vector<8x32xf32>
    %122 = vector.extract_strided_slice %38 {offsets = [8, 0], sizes = [8, 32], strides = [1, 1]} : vector<16x32xf32> to vector<8x32xf32>
    %123 = vector.extract_strided_slice %39 {offsets = [8, 0], sizes = [8, 32], strides = [1, 1]} : vector<16x32xf32> to vector<8x32xf32>
    %124 = vector.extract_strided_slice %40 {offsets = [8, 0], sizes = [8, 32], strides = [1, 1]} : vector<16x32xf32> to vector<8x32xf32>
    %125 = vector.extract_strided_slice %1 {offsets = [1, 0], sizes = [1, 8], strides = [1, 1]} : vector<2x8xf32> to vector<1x8xf32>
    %126 = vector.extract_strided_slice %122 {offsets = [0, 0], sizes = [8, 8], strides = [1, 1]} : vector<8x32xf32> to vector<8x8xf32>
    %127 = vector.extract_strided_slice %123 {offsets = [0, 0], sizes = [8, 8], strides = [1, 1]} : vector<8x32xf32> to vector<8x8xf32>
    %128 = vector.extract_strided_slice %124 {offsets = [0, 0], sizes = [8, 8], strides = [1, 1]} : vector<8x32xf32> to vector<8x8xf32>
    %cst_34 = arith.constant dense<0.000000e+00> : vector<8x8xf32>
    %129 = tpu.matmul %126, %127, %cst_34 {dimension_numbers = #tpu.dot_dimension_numbers<[1], [1], [0], [0], [0, 0, 1, 0], [], []>} : vector<8x8xf32>, vector<8x8xf32>, vector<8x8xf32> -> vector<8x8xf32>
    %cst_35 = arith.constant 0.353553385 : f32
    %130 = vector.broadcast %cst_35 : f32 to vector<8x8xf32>
    %131 = arith.mulf %129, %130 : vector<8x8xf32>
    %132 = vector.broadcast %125 : vector<1x8xf32> to vector<8x8xf32>
    %133 = arith.addf %131, %132 : vector<8x8xf32>
    %cst_36 = arith.constant dense<0xFF800000> : vector<8xf32>
    %134 = vector.multi_reduction <maximumf>, %133, %cst_36 [1] : vector<8x8xf32> to vector<8xf32>
    %135 = vector.shape_cast %134 : vector<8xf32> to vector<8x1xf32>
    %136 = vector.broadcast %135 : vector<8x1xf32> to vector<8x8xf32>
    %137 = arith.subf %133, %136 : vector<8x8xf32>
    %138 = math.exp %137 : vector<8x8xf32>
    %cst_37 = arith.constant dense<0.000000e+00> : vector<8xf32>
    %139 = vector.multi_reduction <add>, %138, %cst_37 [1] : vector<8x8xf32> to vector<8xf32>
    %140 = vector.shape_cast %139 : vector<8xf32> to vector<8x1xf32>
    %141 = tpu.reciprocal %140 {approx = true} : vector<8x1xf32> -> vector<8x1xf32>
    %142 = vector.broadcast %141 : vector<8x1xf32> to vector<8x8xf32>
    %143 = arith.mulf %138, %142 : vector<8x8xf32>
    %cst_38 = arith.constant dense<0.000000e+00> : vector<8x8xf32>
    %144 = tpu.matmul %143, %128, %cst_38 {dimension_numbers = #tpu.dot_dimension_numbers<[1], [0], [0], [1], [0, 0, 1, 1], [], []>} : vector<8x8xf32>, vector<8x8xf32>, vector<8x8xf32> -> vector<8x8xf32>
    %145 = vector.extract_strided_slice %122 {offsets = [0, 8], sizes = [8, 8], strides = [1, 1]} : vector<8x32xf32> to vector<8x8xf32>
    %146 = vector.extract_strided_slice %123 {offsets = [0, 8], sizes = [8, 8], strides = [1, 1]} : vector<8x32xf32> to vector<8x8xf32>
    %147 = vector.extract_strided_slice %124 {offsets = [0, 8], sizes = [8, 8], strides = [1, 1]} : vector<8x32xf32> to vector<8x8xf32>
    %cst_39 = arith.constant dense<0.000000e+00> : vector<8x8xf32>
    %148 = tpu.matmul %145, %146, %cst_39 {dimension_numbers = #tpu.dot_dimension_numbers<[1], [1], [0], [0], [0, 0, 1, 0], [], []>} : vector<8x8xf32>, vector<8x8xf32>, vector<8x8xf32> -> vector<8x8xf32>
    %cst_40 = arith.constant 0.353553385 : f32
    %149 = vector.broadcast %cst_40 : f32 to vector<8x8xf32>
    %150 = arith.mulf %148, %149 : vector<8x8xf32>
    %151 = vector.broadcast %125 : vector<1x8xf32> to vector<8x8xf32>
    %152 = arith.addf %150, %151 : vector<8x8xf32>
    %cst_41 = arith.constant dense<0xFF800000> : vector<8xf32>
    %153 = vector.multi_reduction <maximumf>, %152, %cst_41 [1] : vector<8x8xf32> to vector<8xf32>
    %154 = vector.shape_cast %153 : vector<8xf32> to vector<8x1xf32>
    %155 = vector.broadcast %154 : vector<8x1xf32> to vector<8x8xf32>
    %156 = arith.subf %152, %155 : vector<8x8xf32>
    %157 = math.exp %156 : vector<8x8xf32>
    %cst_42 = arith.constant dense<0.000000e+00> : vector<8xf32>
    %158 = vector.multi_reduction <add>, %157, %cst_42 [1] : vector<8x8xf32> to vector<8xf32>
    %159 = vector.shape_cast %158 : vector<8xf32> to vector<8x1xf32>
    %160 = tpu.reciprocal %159 {approx = true} : vector<8x1xf32> -> vector<8x1xf32>
    %161 = vector.broadcast %160 : vector<8x1xf32> to vector<8x8xf32>
    %162 = arith.mulf %157, %161 : vector<8x8xf32>
    %cst_43 = arith.constant dense<0.000000e+00> : vector<8x8xf32>
    %163 = tpu.matmul %162, %147, %cst_43 {dimension_numbers = #tpu.dot_dimension_numbers<[1], [0], [0], [1], [0, 0, 1, 1], [], []>} : vector<8x8xf32>, vector<8x8xf32>, vector<8x8xf32> -> vector<8x8xf32>
    %164 = vector.extract_strided_slice %122 {offsets = [0, 16], sizes = [8, 8], strides = [1, 1]} : vector<8x32xf32> to vector<8x8xf32>
    %165 = vector.extract_strided_slice %123 {offsets = [0, 16], sizes = [8, 8], strides = [1, 1]} : vector<8x32xf32> to vector<8x8xf32>
    %166 = vector.extract_strided_slice %124 {offsets = [0, 16], sizes = [8, 8], strides = [1, 1]} : vector<8x32xf32> to vector<8x8xf32>
    %cst_44 = arith.constant dense<0.000000e+00> : vector<8x8xf32>
    %167 = tpu.matmul %164, %165, %cst_44 {dimension_numbers = #tpu.dot_dimension_numbers<[1], [1], [0], [0], [0, 0, 1, 0], [], []>} : vector<8x8xf32>, vector<8x8xf32>, vector<8x8xf32> -> vector<8x8xf32>
    %cst_45 = arith.constant 0.353553385 : f32
    %168 = vector.broadcast %cst_45 : f32 to vector<8x8xf32>
    %169 = arith.mulf %167, %168 : vector<8x8xf32>
    %170 = vector.broadcast %125 : vector<1x8xf32> to vector<8x8xf32>
    %171 = arith.addf %169, %170 : vector<8x8xf32>
    %cst_46 = arith.constant dense<0xFF800000> : vector<8xf32>
    %172 = vector.multi_reduction <maximumf>, %171, %cst_46 [1] : vector<8x8xf32> to vector<8xf32>
    %173 = vector.shape_cast %172 : vector<8xf32> to vector<8x1xf32>
    %174 = vector.broadcast %173 : vector<8x1xf32> to vector<8x8xf32>
    %175 = arith.subf %171, %174 : vector<8x8xf32>
    %176 = math.exp %175 : vector<8x8xf32>
    %cst_47 = arith.constant dense<0.000000e+00> : vector<8xf32>
    %177 = vector.multi_reduction <add>, %176, %cst_47 [1] : vector<8x8xf32> to vector<8xf32>
    %178 = vector.shape_cast %177 : vector<8xf32> to vector<8x1xf32>
    %179 = tpu.reciprocal %178 {approx = true} : vector<8x1xf32> -> vector<8x1xf32>
    %180 = vector.broadcast %179 : vector<8x1xf32> to vector<8x8xf32>
    %181 = arith.mulf %176, %180 : vector<8x8xf32>
    %cst_48 = arith.constant dense<0.000000e+00> : vector<8x8xf32>
    %182 = tpu.matmul %181, %166, %cst_48 {dimension_numbers = #tpu.dot_dimension_numbers<[1], [0], [0], [1], [0, 0, 1, 1], [], []>} : vector<8x8xf32>, vector<8x8xf32>, vector<8x8xf32> -> vector<8x8xf32>
    %183 = vector.extract_strided_slice %122 {offsets = [0, 24], sizes = [8, 8], strides = [1, 1]} : vector<8x32xf32> to vector<8x8xf32>
    %184 = vector.extract_strided_slice %123 {offsets = [0, 24], sizes = [8, 8], strides = [1, 1]} : vector<8x32xf32> to vector<8x8xf32>
    %185 = vector.extract_strided_slice %124 {offsets = [0, 24], sizes = [8, 8], strides = [1, 1]} : vector<8x32xf32> to vector<8x8xf32>
    %cst_49 = arith.constant dense<0.000000e+00> : vector<8x8xf32>
    %186 = tpu.matmul %183, %184, %cst_49 {dimension_numbers = #tpu.dot_dimension_numbers<[1], [1], [0], [0], [0, 0, 1, 0], [], []>} : vector<8x8xf32>, vector<8x8xf32>, vector<8x8xf32> -> vector<8x8xf32>
    %cst_50 = arith.constant 0.353553385 : f32
    %187 = vector.broadcast %cst_50 : f32 to vector<8x8xf32>
    %188 = arith.mulf %186, %187 : vector<8x8xf32>
    %189 = vector.broadcast %125 : vector<1x8xf32> to vector<8x8xf32>
    %190 = arith.addf %188, %189 : vector<8x8xf32>
    %cst_51 = arith.constant dense<0xFF800000> : vector<8xf32>
    %191 = vector.multi_reduction <maximumf>, %190, %cst_51 [1] : vector<8x8xf32> to vector<8xf32>
    %192 = vector.shape_cast %191 : vector<8xf32> to vector<8x1xf32>
    %193 = vector.broadcast %192 : vector<8x1xf32> to vector<8x8xf32>
    %194 = arith.subf %190, %193 : vector<8x8xf32>
    %195 = math.exp %194 : vector<8x8xf32>
    %cst_52 = arith.constant dense<0.000000e+00> : vector<8xf32>
    %196 = vector.multi_reduction <add>, %195, %cst_52 [1] : vector<8x8xf32> to vector<8xf32>
    %197 = vector.shape_cast %196 : vector<8xf32> to vector<8x1xf32>
    %198 = tpu.reciprocal %197 {approx = true} : vector<8x1xf32> -> vector<8x1xf32>
    %199 = vector.broadcast %198 : vector<8x1xf32> to vector<8x8xf32>
    %200 = arith.mulf %195, %199 : vector<8x8xf32>
    %cst_53 = arith.constant dense<0.000000e+00> : vector<8x8xf32>
    %201 = tpu.matmul %200, %185, %cst_53 {dimension_numbers = #tpu.dot_dimension_numbers<[1], [0], [0], [1], [0, 0, 1, 1], [], []>} : vector<8x8xf32>, vector<8x8xf32>, vector<8x8xf32> -> vector<8x8xf32>
    %202 = tpu.concatenate %144, %163, %182, %201 in 1 : vector<8x8xf32>, vector<8x8xf32>, vector<8x8xf32>, vector<8x8xf32> -> vector<8x32xf32>
    %203 = tpu.concatenate %121, %202 in 0 : vector<8x32xf32>, vector<8x32xf32> -> vector<16x32xf32>
    %c0_54 = arith.constant 0 : index
    %c0_55 = arith.constant 0 : index
    %204 = vector.load %arg6[%c0_54, %c0_55] : memref<32x32xf32, #tpu.memory_space<vmem>>, vector<32x32xf32>
    %cst_56 = arith.constant dense<0.000000e+00> : vector<16x32xf32>
    %205 = tpu.matmul %203, %204, %cst_56 {dimension_numbers = #tpu.dot_dimension_numbers<[1], [0], [0], [1], [0, 0, 1, 1], [], []>} : vector<16x32xf32>, vector<32x32xf32>, vector<16x32xf32> -> vector<16x32xf32>
    %206 = vector.broadcast %9 : vector<1x32xf32> to vector<16x32xf32>
    %207 = arith.addf %205, %206 : vector<16x32xf32>
    %208 = arith.addf %0, %207 : vector<16x32xf32>
    %cst_57 = arith.constant dense<0.000000e+00> : vector<16xf32>
    %209 = vector.multi_reduction <add>, %208, %cst_57 [1] : vector<16x32xf32> to vector<16xf32>
    %210 = vector.shape_cast %209 : vector<16xf32> to vector<16x1xf32>
    %cst_58 = arith.constant 3.200000e+01 : f32
    %211 = vector.broadcast %cst_58 : f32 to vector<16x1xf32>
    %212 = arith.divf %210, %211 : vector<16x1xf32>
    %213 = vector.broadcast %212 : vector<16x1xf32> to vector<16x32xf32>
    %214 = arith.subf %208, %213 : vector<16x32xf32>
    %215 = arith.mulf %214, %214 : vector<16x32xf32>
    %cst_59 = arith.constant dense<0.000000e+00> : vector<16xf32>
    %216 = vector.multi_reduction <add>, %215, %cst_59 [1] : vector<16x32xf32> to vector<16xf32>
    %217 = vector.shape_cast %216 : vector<16xf32> to vector<16x1xf32>
    %cst_60 = arith.constant 3.100000e+01 : f32
    %218 = vector.broadcast %cst_60 : f32 to vector<16x1xf32>
    %219 = arith.divf %217, %218 : vector<16x1xf32>
    %220 = math.sqrt %219 : vector<16x1xf32>
    %221 = vector.broadcast %212 : vector<16x1xf32> to vector<16x32xf32>
    %222 = arith.subf %208, %221 : vector<16x32xf32>
    %223 = vector.broadcast %6 : vector<1x32xf32> to vector<16x32xf32>
    %224 = arith.mulf %223, %222 : vector<16x32xf32>
    %cst_61 = arith.constant 9.99999997E-7 : f32
    %225 = vector.broadcast %cst_61 : f32 to vector<16x1xf32>
    %226 = arith.addf %220, %225 : vector<16x1xf32>
    %227 = vector.broadcast %226 : vector<16x1xf32> to vector<16x32xf32>
    %228 = arith.divf %224, %227 : vector<16x32xf32>
    %229 = vector.broadcast %7 : vector<1x32xf32> to vector<16x32xf32>
    %230 = arith.addf %228, %229 : vector<16x32xf32>
    %c0_62 = arith.constant 0 : index
    %c0_63 = arith.constant 0 : index
    %231 = vector.load %arg7[%c0_62, %c0_63] : memref<32x64xf32, #tpu.memory_space<vmem>>, vector<32x64xf32>
    %cst_64 = arith.constant dense<0.000000e+00> : vector<16x64xf32>
    %232 = tpu.matmul %230, %231, %cst_64 {dimension_numbers = #tpu.dot_dimension_numbers<[1], [0], [0], [1], [0, 0, 1, 1], [], []>} : vector<16x32xf32>, vector<32x64xf32>, vector<16x64xf32> -> vector<16x64xf32>
    %233 = vector.broadcast %10 : vector<1x64xf32> to vector<16x64xf32>
    %234 = arith.addf %232, %233 : vector<16x64xf32>
    %cst_65 = arith.constant 0.000000e+00 : f32
    %235 = vector.broadcast %cst_65 : f32 to vector<16x64xf32>
    %236 = arith.maximumf %234, %235 : vector<16x64xf32>
    %c0_66 = arith.constant 0 : index
    %c0_67 = arith.constant 0 : index
    %237 = vector.load %arg8[%c0_66, %c0_67] : memref<64x32xf32, #tpu.memory_space<vmem>>, vector<64x32xf32>
    %cst_68 = arith.constant dense<0.000000e+00> : vector<16x32xf32>
    %238 = tpu.matmul %236, %237, %cst_68 {dimension_numbers = #tpu.dot_dimension_numbers<[1], [0], [0], [1], [0, 0, 1, 1], [], []>} : vector<16x64xf32>, vector<64x32xf32>, vector<16x32xf32> -> vector<16x32xf32>
    %239 = vector.broadcast %11 : vector<1x32xf32> to vector<16x32xf32>
    %240 = arith.addf %238, %239 : vector<16x32xf32>
    %241 = arith.addf %208, %240 : vector<16x32xf32>
    %c0_69 = arith.constant 0 : index
    %c0_70 = arith.constant 0 : index
    %242 = vector.load %arg9[%c0_69, %c0_70] : memref<16x32xf32, #tpu.memory_space<vmem>>, vector<16x32xf32>
    tpu.vector_store %arg9[%c0_69, %c0_70], %241 {strides = array<i32>} : memref<16x32xf32, #tpu.memory_space<vmem>>, vector<16x32xf32>,
    return
  }
  func.func @transform_0(%arg0: i32) -> (i32, i32) {
    %c0_i32 = arith.constant 0 : i32
    %c0_i32_0 = arith.constant 0 : i32
    %c0_i32_1 = arith.constant 0 : i32
    return %c0_i32, %c0_i32_0 : i32, i32
  }
  func.func @transform_1(%arg0: i32) -> (i32, i32) {
    %c0_i32 = arith.constant 0 : i32
    %c0_i32_0 = arith.constant 0 : i32
    %c0_i32_1 = arith.constant 0 : i32
    return %c0_i32, %c0_i32_0 : i32, i32
  }
  func.func @transform_2(%arg0: i32) -> (i32, i32) {
    %c0_i32 = arith.constant 0 : i32
    %c0_i32_0 = arith.constant 0 : i32
    %c0_i32_1 = arith.constant 0 : i32
    return %c0_i32, %c0_i32_0 : i32, i32
  }
  func.func @transform_3(%arg0: i32) -> (i32, i32) {
    %c0_i32 = arith.constant 0 : i32
    %c0_i32_0 = arith.constant 0 : i32
    %c0_i32_1 = arith.constant 0 : i32
    return %c0_i32, %c0_i32_0 : i32, i32
  }
  func.func @transform_4(%arg0: i32) -> (i32, i32) {
    %c0_i32 = arith.constant 0 : i32
    %c0_i32_0 = arith.constant 0 : i32
    %c0_i32_1 = arith.constant 0 : i32
    return %c0_i32, %c0_i32_0 : i32, i32
  }
  func.func @transform_5(%arg0: i32) -> (i32, i32) {
    %c0_i32 = arith.constant 0 : i32
    %c0_i32_0 = arith.constant 0 : i32
    %c0_i32_1 = arith.constant 0 : i32
    return %c0_i32, %c0_i32_0 : i32, i32
  }
  func.func @transform_6(%arg0: i32) -> (i32, i32) {
    %c0_i32 = arith.constant 0 : i32
    %c0_i32_0 = arith.constant 0 : i32
    %c0_i32_1 = arith.constant 0 : i32
    return %c0_i32, %c0_i32_0 : i32, i32
  }
  func.func @transform_7(%arg0: i32) -> (i32, i32) {
    %c0_i32 = arith.constant 0 : i32
    %c0_i32_0 = arith.constant 0 : i32
    %c0_i32_1 = arith.constant 0 : i32
    return %c0_i32, %c0_i32_0 : i32, i32
  }
  func.func @transform_8(%arg0: i32) -> (i32, i32) {
    %c0_i32 = arith.constant 0 : i32
    %c0_i32_0 = arith.constant 0 : i32
    %c0_i32_1 = arith.constant 0 : i32
    return %c0_i32, %c0_i32_0 : i32, i32
  }
}

</mosaic_0001>

<llo_original>
// kernel: tpu_custom_call.1
$region0: #{tpu_custom_call.1}
  #allocation0 [shape = 'u32[]', space=smem, size = 0x4, offset = 0x4, fixed_abs, tag = 'smem constant byte address 0x4 - core index']
  #allocation1 [shape = 'u32[144,128]{1,0:T(1,128)}', space=vmem, size = 0x12000, scoped, tag = 'internal scratch']
  %s0 = inlined_call_operand.hbm [shape: f32[16,32], index: 0, kind: input, shape index: {}]
  %s1 = inlined_call_operand.hbm [shape: f32[2,8], index: 1, kind: input, shape index: {}]
  %s2 = inlined_call_operand.hbm [shape: f32[4,32], index: 2, kind: input, shape index: {}]
  %s3 = inlined_call_operand.vmem [shape: f32[4,96], index: 3, kind: input, shape index: {}]
  %s4 = inlined_call_operand.vmem [shape: f32[32,96], index: 4, kind: input, shape index: {}]
  %s5 = inlined_call_operand.vmem [shape: f32[32,32], index: 5, kind: input, shape index: {}]
  %s6 = inlined_call_operand.vmem [shape: f32[32,64], index: 6, kind: input, shape index: {}]
  %s7 = inlined_call_operand.vmem [shape: f32[64,32], index: 7, kind: input, shape index: {}]
  %s8 = inlined_call_operand.hbm [shape: f32[16,32], index: 8, kind: output, shape index: {}]
  %s9 = sld [smem:[#allocation0]]
  $region54: #{tpu_custom_call.1} parent=0
    _
  %s11 = ssub.s32 1, %s9
  %s12 = scalar_select 0, %s11, %s9
  $region1: #{tpu_custom_call.1} parent=0
    #allocation2 [shape = 'u8[8192]{0}', space=vmem, size = 0x2000, scoped, tag = 'input window, operand 0, single buffered']
    #allocation3 [shape = 's32[1]{0}', space=sflag, size = 0x4, scoped, tag = 'scoped memory for tpu_custom_call.1']
    #allocation4 [shape = 's32[1]{0}', space=sflag, size = 0x4, scoped, tag = 'scoped memory for tpu_custom_call.1']
    #allocation5 [shape = 'u8[1024]{0}', space=vmem, size = 0x400, scoped, tag = 'input window, operand 1, single buffered']
    #allocation6 [shape = 's32[1]{0}', space=sflag, size = 0x4, scoped, tag = 'scoped memory for tpu_custom_call.1']
    #allocation7 [shape = 'u8[2048]{0}', space=vmem, size = 0x800, scoped, tag = 'input window, operand 2, single buffered']
    #allocation8 [shape = 'u8[8192]{0}', space=vmem, size = 0x2000, scoped, tag = 'output window, operand 0, single buffered']
    %13 = vsyncpa [#allocation3], 0
    %14 = vsyncpa [#allocation6], 0
    %15 = vsyncpa [#allocation4], 0
    // Predicated region
    $region2: #{tpu_custom_call.1} parent=1 // pred_check
      _
    $region3: #{tpu_custom_call.1} parent=1 // pred_check_branch
      %17 = sbr.rel (0) target = $region5
    $region4: #{tpu_custom_call.1} parent=1 // pred_region
      %s19 = ssub.s32 256, 256
      %20 = vsyncadd [#allocation3], %s19
      %s21 = sshll.u32 [#allocation2], 4
      %s22 = int_to_ptr.vmem [resolvable:$true] %s21
      %27 = dma.hbm_to_vmem [thread:$0]  %s0, 256, %s22, [#allocation3], 128, 128, 8
    $region5: #{tpu_custom_call.1} parent=1 // pred_fallthru
      _
    // Predicated region
    $region6: #{tpu_custom_call.1} parent=1 // pred_check
      _
    $region7: #{tpu_custom_call.1} parent=1 // pred_check_branch
      %29 = sbr.rel (0) target = $region9
    $region8: #{tpu_custom_call.1} parent=1 // pred_region
      %s31 = ssub.s32 32, 32
      %32 = vsyncadd [#allocation6], %s31
      %s34 = sshll.u32 [#allocation5], 4
      %s35 = int_to_ptr.vmem [resolvable:$true] %s34
      %37 = dma.hbm_to_vmem [thread:$0]  %s1, 32, %s35, [#allocation6]
    $region9: #{tpu_custom_call.1} parent=1 // pred_fallthru
      _
    // Predicated region
    $region10: #{tpu_custom_call.1} parent=1 // pred_check
      _
    $region11: #{tpu_custom_call.1} parent=1 // pred_check_branch
      %39 = sbr.rel (0) target = $region13
    $region12: #{tpu_custom_call.1} parent=1 // pred_region
      %s41 = ssub.s32 64, 64
      %42 = vsyncadd [#allocation6], %s41
      %s44 = sshll.u32 [#allocation7], 4
      %s45 = int_to_ptr.vmem [resolvable:$true] %s44
      %47 = dma.hbm_to_vmem [thread:$0]  %s2, 64, %s45, [#allocation6]
    $region13: #{tpu_custom_call.1} parent=1 // pred_fallthru
      _
    // Predicated region
    $region14: #{tpu_custom_call.1} parent=1 // pred_check
      _
    $region15: #{tpu_custom_call.1} parent=1 // pred_check_branch
      %49 = sbr.rel (0) target = $region17
    $region16: #{tpu_custom_call.1} parent=1 // pred_region
      _
    $region17: #{tpu_custom_call.1} parent=1 // pred_fallthru
      _
    // Predicated region
    $region18: #{tpu_custom_call.1} parent=1 // pred_check
      _
    $region19: #{tpu_custom_call.1} parent=1 // pred_check_branch
      %51 = sbr.rel (0) target = $region21
    $region20: #{tpu_custom_call.1} parent=1 // pred_region
      _
    $region21: #{tpu_custom_call.1} parent=1 // pred_fallthru
      _
    // Predicated region
    $region22: #{tpu_custom_call.1} parent=1 // pred_check
      _
    $region23: #{tpu_custom_call.1} parent=1 // pred_check_branch
      %53 = sbr.rel (0) target = $region25
    $region24: #{tpu_custom_call.1} parent=1 // pred_region
      _
    $region25: #{tpu_custom_call.1} parent=1 // pred_fallthru
      _
    // Predicated region
    $region26: #{tpu_custom_call.1} parent=1 // pred_check
      _
    $region27: #{tpu_custom_call.1} parent=1 // pred_check_branch
      %55 = sbr.rel (0) target = $region29
    $region28: #{tpu_custom_call.1} parent=1 // pred_region
      _
    $region29: #{tpu_custom_call.1} parent=1 // pred_fallthru
      _
    // Predicated region
    $region30: #{tpu_custom_call.1} parent=1 // pred_check
      _
    $region31: #{tpu_custom_call.1} parent=1 // pred_check_branch
      %57 = sbr.rel (0) target = $region33
    $region32: #{tpu_custom_call.1} parent=1 // pred_region
      _
    $region33: #{tpu_custom_call.1} parent=1 // pred_fallthru
      _
    // Predicated region
    $region34: #{tpu_custom_call.1} parent=1 // pred_check
      _
    $region35: #{tpu_custom_call.1} parent=1 // pred_check_branch
      %59 = sbr.rel (0) target = $region37
    $region36: #{tpu_custom_call.1} parent=1 // pred_region
      %60 = dma.done [#allocation3], 256
    $region37: #{tpu_custom_call.1} parent=1 // pred_fallthru
      _
    // Predicated region
    $region38: #{tpu_custom_call.1} parent=1 // pred_check
      _
    $region39: #{tpu_custom_call.1} parent=1 // pred_check_branch
      %62 = sbr.rel (0) target = $region41
    $region40: #{tpu_custom_call.1} parent=1 // pred_region
      %63 = dma.done [#allocation6], 32
    $region41: #{tpu_custom_call.1} parent=1 // pred_fallthru
      _
    // Predicated region
    $region42: #{tpu_custom_call.1} parent=1 // pred_check
      _
    $region43: #{tpu_custom_call.1} parent=1 // pred_check_branch
      %65 = sbr.rel (0) target = $region45
    $region44: #{tpu_custom_call.1} parent=1 // pred_region
      %66 = dma.done [#allocation6], 64
    $region45: #{tpu_custom_call.1} parent=1 // pred_fallthru
      _
    %v67 = vld [vmem:[#allocation2] sm:$0xff]
    %v68 = vld [vmem:[#allocation2 + $0x8] sm:$0xff]
    %v69 = vld [vmem:[#allocation5] sm:$0x3]
    %v70 = vld [vmem:[#allocation7] sm:$0xf]
    %v71 = vld [vmem:[%s3] sm:$0xf]
    %vm72 = vcmask 261120
    %v73 = vsel %vm72, %v67, 0.0
    %74 = vadd.xlane.f32.xlu0 %v73
    %v75 = vpop.xlane.xlu0 %74
    %v76 = vsel %vm72, %v68, 0.0
    %77 = vadd.xlane.f32.xlu0 %v76
    %v78 = vpop.xlane.xlu0 %77
    %v79 = vrcp.pop 32.0
    %v80 = vmul.f32 %v75, %v79
    %v81 = vmul.f32 %v78, %v79
    %v82 = vsub.f32 %v67, %v80
    %v83 = vsub.f32 %v68, %v81
    %v84 = vmul.f32 %v82, %v82
    %v85 = vmul.f32 %v83, %v83
    %v86 = vsel %vm72, %v84, 0.0
    %87 = vadd.xlane.f32.xlu0 %v86
    %v88 = vpop.xlane.xlu0 %87
    %v89 = vsel %vm72, %v85, 0.0
    %90 = vadd.xlane.f32.xlu0 %v89
    %v91 = vpop.xlane.xlu0 %90
    %v92 = vrcp.pop 31.0
    %v93 = vmul.f32 %v88, %v92
    %v94 = vmul.f32 %v91, %v92
    %v95 = vrsqrt.pop %v93
    %v96 = vmul.f32 %v93, %v95
    %vm97 = vcmp.eq.f32.partialorder %v93, inf
    %v98 = vsel %vm97, %v93, %v96
    %vm99 = vcmp.eq.f32.partialorder %v93, 0.0
    %v100 = vand.u32 %v93, 2147483648
    %v101 = vsel %vm99, %v100, %v98
    %v102 = vrsqrt.pop %v94
    %v103 = vmul.f32 %v94, %v102
    %vm104 = vcmp.eq.f32.partialorder %v94, inf
    %v105 = vsel %vm104, %v94, %v103
    %vm106 = vcmp.eq.f32.partialorder %v94, 0.0
    %v107 = vand.u32 %v94, 2147483648
    %v108 = vsel %vm106, %v107, %v105
    %v109 = vlaneseq
    %v110 = vshrl.u32 %v109, 7
    %v111 = vsub.s32 0, %v110
    %v112 = vrot.slane %v70, %v111
    %v113 = vmul.f32 %v112, %v82
    %v114 = vmul.f32 %v112, %v83
    %v115 = vadd.f32 %v101, 1e-06
    %v116 = vadd.f32 %v108, 1e-06
    %v117 = vrcp.pop %v115
    %v118 = vmul.f32 %v113, %v117
    %v119 = vrcp.pop %v116
    %v120 = vmul.f32 %v114, %v119
    %v121 = vlaneseq
    %v122 = vshrl.u32 %v121, 7
    %v123 = vsub.s32 1, %v122
    %v124 = vrot.slane %v70, %v123
    %v125 = vadd.f32 %v118, %v124
    %v126 = vadd.f32 %v120, %v124
    %v127 = vld [vmem:[%s4] sm:$0xff]
    %v128 = vld [vmem:[%s4 + $0x8] sm:$0xff]
    %v129 = vld [vmem:[%s4 + $0x10] sm:$0xff]
    %v130 = vld [vmem:[%s4 + $0x18] sm:$0xff]
    %v131 = vlaneseq
    %v132 = vshrl.u32 %v131, 7
    %v133 = vsub.s32 0, %v132
    %v134 = vrot.slane %v71, %v133
    %v136 = vsel %vm72, %v125, 0
    %v139 = vsel %vm72, %v126, 0
    %141 = vmatprep.subr.mxu0 0.0
    %142 = vmatpush1.msra.mxu0 0.0
    %143 = vmatprep.subr.mxu0 0.0
    %144 = vmatpush1.msra.mxu0 0.0
    %145 = vmatprep.subr.mxu0 0.0
    %146 = vmatpush1.msra.mxu0 0.0
    %147 = vmatprep.subr.mxu0 0.0
    %148 = vmatpush1.msra.mxu0 0.0
    %149 = vmatprep.subr.mxu0 0.0
    %150 = vmatpush1.msra.mxu0 0.0
    %151 = vmatprep.subr.mxu0 0.0
    %152 = vmatpush1.msra.mxu0 0.0
    %153 = vmatprep.subr.mxu0 0.0
    %154 = vmatpush1.msra.mxu0 0.0
    %155 = vmatprep.subr.mxu0 0.0
    %156 = vmatpush1.msra.mxu0 0.0
    %157 = vmatprep.subr.mxu0 0.0
    %158 = vmatpush1.msra.mxu0 0.0
    %159 = vmatprep.subr.mxu0 0.0
    %160 = vmatpush1.msra.mxu0 0.0
    %161 = vmatprep.subr.mxu0 0.0
    %162 = vmatpush1.msra.mxu0 0.0
    %163 = vmatprep.subr.mxu0 0.0
    %164 = vmatpush1.msra.mxu0 0.0
    %165 = vmatprep.subr.mxu0 0.0
    %166 = vmatpush1.msra.mxu0 %v130
    %167 = vmatprep.subr.mxu0 0.0
    %168 = vmatpush1.msra.mxu0 %v129
    %169 = vmatprep.subr.mxu0 0.0
    %170 = vmatpush1.msra.mxu0 %v128
    %171 = vmatprep.subr.mxu0 0.0
    %172 = vmatpush1.msra.mxu0 %v127
    %173 = vmatprep.subr.mxu0 0.0
    %174 = vmatpush2.msra.mxu0 0.0
    %175 = vmatprep.subr.mxu0 0.0
    %176 = vmatpush2.msra.mxu0 0.0
    %177 = vmatprep.subr.mxu0 0.0
    %178 = vmatpush2.msra.mxu0 0.0
    %179 = vmatprep.subr.mxu0 0.0
    %180 = vmatpush2.msra.mxu0 0.0
    %181 = vmatprep.subr.mxu0 0.0
    %182 = vmatpush2.msra.mxu0 0.0
    %183 = vmatprep.subr.mxu0 0.0
    %184 = vmatpush2.msra.mxu0 0.0
    %185 = vmatprep.subr.mxu0 0.0
    %186 = vmatpush2.msra.mxu0 0.0
    %187 = vmatprep.subr.mxu0 0.0
    %188 = vmatpush2.msra.mxu0 0.0
    %189 = vmatprep.subr.mxu0 0.0
    %190 = vmatpush2.msra.mxu0 0.0
    %191 = vmatprep.subr.mxu0 0.0
    %192 = vmatpush2.msra.mxu0 0.0
    %193 = vmatprep.subr.mxu0 0.0
    %194 = vmatpush2.msra.mxu0 0.0
    %195 = vmatprep.subr.mxu0 0.0
    %196 = vmatpush2.msra.mxu0 0.0
    %197 = vmatprep.subr.mxu0 0.0
    %198 = vmatpush2.msra.mxu0 0.0
    %199 = vmatprep.subr.mxu0 0.0
    %200 = vmatpush2.msra.mxu0 0.0
    %201 = vmatprep.subr.mxu0 0.0
    %202 = vmatpush2.msra.mxu0 0.0
    %203 = vmatprep.subr.mxu0 0.0
    %204 = vmatpush2.msra.mxu0 0.0
    %205 = vmatprep.mubr.f32.mxu0 0.0
    %206 = vmatmul.mubr.f32.gmra.mxu0 %v136
    %v207 = vpop.f32.mrf.mxu0
    %v208 = vadd.f32 %v134, %v207
    %v209 = vpop.f32.mrf.mxu0
    %210 = vmatprep.mubr.f32.mxu0 0.0
    %211 = vmatmul.mubr.f32.gmra.mxu0 %v139
    %v212 = vpop.f32.mrf.mxu0
    %v213 = vadd.f32 %v134, %v212
    %v214 = vpop.f32.mrf.mxu0
    %215 = vdwg.mxu0
    %217 = vrot.lane.b32.xlu0 %v208, 96
    %v218 = vpop.permute.xlu0 %217
    %vm219 = vcmask 64512
    %v220 = vsel %vm219, %v208, 0
    %v222 = vsel %vm219, %v218, 0
    %224 = vmatprep.subr.mxu0 0.0
    %225 = vmatpush1.xpose.msra.mxu0 0.0
    %226 = vmatprep.subr.mxu0 0.0
    %227 = vmatpush1.xpose.msra.mxu0 0.0
    %228 = vmatprep.subr.mxu0 0.0
    %229 = vmatpush1.xpose.msra.mxu0 0.0
    %230 = vmatprep.subr.mxu0 0.0
    %231 = vmatpush1.xpose.msra.mxu0 0.0
    %232 = vmatprep.subr.mxu0 0.0
    %233 = vmatpush1.xpose.msra.mxu0 0.0
    %234 = vmatprep.subr.mxu0 0.0
    %235 = vmatpush1.xpose.msra.mxu0 0.0
    %236 = vmatprep.subr.mxu0 0.0
    %237 = vmatpush1.xpose.msra.mxu0 0.0
    %238 = vmatprep.subr.mxu0 0.0
    %239 = vmatpush1.xpose.msra.mxu0 0.0
    %240 = vmatprep.subr.mxu0 0.0
    %241 = vmatpush1.xpose.msra.mxu0 0.0
    %242 = vmatprep.subr.mxu0 0.0
    %243 = vmatpush1.xpose.msra.mxu0 0.0
    %244 = vmatprep.subr.mxu0 0.0
    %245 = vmatpush1.xpose.msra.mxu0 0.0
    %246 = vmatprep.subr.mxu0 0.0
    %247 = vmatpush1.xpose.msra.mxu0 0.0
    %248 = vmatprep.subr.mxu0 0.0
    %249 = vmatpush1.xpose.msra.mxu0 0.0
    %250 = vmatprep.subr.mxu0 0.0
    %251 = vmatpush1.xpose.msra.mxu0 0.0
    %252 = vmatprep.subr.mxu0 0.0
    %253 = vmatpush1.xpose.msra.mxu0 0.0
    %254 = vmatprep.subr.mxu0 0.0
    %255 = vmatpush1.xpose.msra.mxu0 %v222
    %256 = vmatprep.subr.mxu0 0.0
    %257 = vmatpush2.xpose.msra.mxu0 0.0
    %258 = vmatprep.subr.mxu0 0.0
    %259 = vmatpush2.xpose.msra.mxu0 0.0
    %260 = vmatprep.subr.mxu0 0.0
    %261 = vmatpush2.xpose.msra.mxu0 0.0
    %262 = vmatprep.subr.mxu0 0.0
    %263 = vmatpush2.xpose.msra.mxu0 0.0
    %264 = vmatprep.subr.mxu0 0.0
    %265 = vmatpush2.xpose.msra.mxu0 0.0
    %266 = vmatprep.subr.mxu0 0.0
    %267 = vmatpush2.xpose.msra.mxu0 0.0
    %268 = vmatprep.subr.mxu0 0.0
    %269 = vmatpush2.xpose.msra.mxu0 0.0
    %270 = vmatprep.subr.mxu0 0.0
    %271 = vmatpush2.xpose.msra.mxu0 0.0
    %272 = vmatprep.subr.mxu0 0.0
    %273 = vmatpush2.xpose.msra.mxu0 0.0
    %274 = vmatprep.subr.mxu0 0.0
    %275 = vmatpush2.xpose.msra.mxu0 0.0
    %276 = vmatprep.subr.mxu0 0.0
    %277 = vmatpush2.xpose.msra.mxu0 0.0
    %278 = vmatprep.subr.mxu0 0.0
    %279 = vmatpush2.xpose.msra.mxu0 0.0
    %280 = vmatprep.subr.mxu0 0.0
    %281 = vmatpush2.xpose.msra.mxu0 0.0
    %282 = vmatprep.subr.mxu0 0.0
    %283 = vmatpush2.xpose.msra.mxu0 0.0
    %284 = vmatprep.subr.mxu0 0.0
    %285 = vmatpush2.xpose.msra.mxu0 0.0
    %286 = vmatprep.subr.mxu0 0.0
    %287 = vmatpush2.xpose.msra.mxu0 0.0
    %288 = vmatprep.mubr.f32.mxu0 0.0
    %289 = vmatmul.mubr.f32.gmra.mxu0 %v220
    %v290 = vpop.f32.mrf.mxu0
    %v291 = vadd.f32 0.0, %v290
    %v292 = vpop.f32.mrf.mxu0
    %293 = vdwg.mxu0
    %v294 = vmul.f32 %v291, 0.35355338
    %v295 = vlaneseq
    %v296 = vshrl.u32 %v295, 7
    %v297 = vsub.s32 0, %v296
    %v298 = vrot.slane %v69, %v297
    %v299 = vadd.f32 %v294, %v298
    %v300 = vsel %vm219, %v299, -inf
    %301 = vmax.xlane.f32.xlu0 %v300
    %v302 = vpop.xlane.xlu0 %301
    %v303 = vsub.f32 %v299, %v302
    %v304 = vmul.f32 %v303, 1.442695
    %v305 = vpow.pop %v304
    %v306 = vsel %vm219, %v305, 0.0
    %307 = vadd.xlane.f32.xlu0 %v306
    %v308 = vpop.xlane.xlu0 %307
    %v309 = vrcp.pop %v308
    %v310 = vmul.f32 %v305, %v309
    %311 = vrot.lane.b32.xlu0 %v208, 64
    %v312 = vpop.permute.xlu0 %311
    %v315 = vsel %vm219, %v310, 0
    %317 = vmatprep.subr.mxu0 0.0
    %318 = vmatpush1.msra.mxu0 0.0
    %319 = vmatprep.subr.mxu0 0.0
    %320 = vmatpush1.msra.mxu0 0.0
    %321 = vmatprep.subr.mxu0 0.0
    %322 = vmatpush1.msra.mxu0 0.0
    %323 = vmatprep.subr.mxu0 0.0
    %324 = vmatpush1.msra.mxu0 0.0
    %325 = vmatprep.subr.mxu0 0.0
    %326 = vmatpush1.msra.mxu0 0.0
    %327 = vmatprep.subr.mxu0 0.0
    %328 = vmatpush1.msra.mxu0 0.0
    %329 = vmatprep.subr.mxu0 0.0
    %330 = vmatpush1.msra.mxu0 0.0
    %331 = vmatprep.subr.mxu0 0.0
    %332 = vmatpush1.msra.mxu0 0.0
    %333 = vmatprep.subr.mxu0 0.0
    %334 = vmatpush1.msra.mxu0 0.0
    %335 = vmatprep.subr.mxu0 0.0
    %336 = vmatpush1.msra.mxu0 0.0
    %337 = vmatprep.subr.mxu0 0.0
    %338 = vmatpush1.msra.mxu0 0.0
    %339 = vmatprep.subr.mxu0 0.0
    %340 = vmatpush1.msra.mxu0 0.0
    %341 = vmatprep.subr.mxu0 0.0
    %342 = vmatpush1.msra.mxu0 0.0
    %343 = vmatprep.subr.mxu0 0.0
    %344 = vmatpush1.msra.mxu0 0.0
    %345 = vmatprep.subr.mxu0 0.0
    %346 = vmatpush1.msra.mxu0 0.0
    %347 = vmatprep.subr.mxu0 0.0
    %348 = vmatpush1.msra.mxu0 %v312
    %349 = vmatprep.subr.mxu0 0.0
    %350 = vmatpush2.msra.mxu0 0.0
    %351 = vmatprep.subr.mxu0 0.0
    %352 = vmatpush2.msra.mxu0 0.0
    %353 = vmatprep.subr.mxu0 0.0
    %354 = vmatpush2.msra.mxu0 0.0
    %355 = vmatprep.subr.mxu0 0.0
    %356 = vmatpush2.msra.mxu0 0.0
    %357 = vmatprep.subr.mxu0 0.0
    %358 = vmatpush2.msra.mxu0 0.0
    %359 = vmatprep.subr.mxu0 0.0
    %360 = vmatpush2.msra.mxu0 0.0
    %361 = vmatprep.subr.mxu0 0.0
    %362 = vmatpush2.msra.mxu0 0.0
    %363 = vmatprep.subr.mxu0 0.0
    %364 = vmatpush2.msra.mxu0 0.0
    %365 = vmatprep.subr.mxu0 0.0
    %366 = vmatpush2.msra.mxu0 0.0
    %367 = vmatprep.subr.mxu0 0.0
    %368 = vmatpush2.msra.mxu0 0.0
    %369 = vmatprep.subr.mxu0 0.0
    %370 = vmatpush2.msra.mxu0 0.0
    %371 = vmatprep.subr.mxu0 0.0
    %372 = vmatpush2.msra.mxu0 0.0
    %373 = vmatprep.subr.mxu0 0.0
    %374 = vmatpush2.msra.mxu0 0.0
    %375 = vmatprep.subr.mxu0 0.0
    %376 = vmatpush2.msra.mxu0 0.0
    %377 = vmatprep.subr.mxu0 0.0
    %378 = vmatpush2.msra.mxu0 0.0
    %379 = vmatprep.subr.mxu0 0.0
    %380 = vmatpush2.msra.mxu0 0.0
    %381 = vmatprep.mubr.f32.mxu0 0.0
    %382 = vmatmul.mubr.f32.gmra.mxu0 %v315
    %v383 = vpop.f32.mrf.mxu0
    %v384 = vadd.f32 0.0, %v383
    %v385 = vpop.f32.mrf.mxu0
    %386 = vdwg.mxu0
    %387 = vrot.lane.b32.xlu0 %v208, 120
    %v388 = vpop.permute.xlu0 %387
    %389 = vrot.lane.b32.xlu0 %v208, 88
    %v390 = vpop.permute.xlu0 %389
    %v391 = vsel %vm219, %v388, 0
    %v393 = vsel %vm219, %v390, 0
    %395 = vmatprep.subr.mxu0 0.0
    %396 = vmatpush1.xpose.msra.mxu0 0.0
    %397 = vmatprep.subr.mxu0 0.0
    %398 = vmatpush1.xpose.msra.mxu0 0.0
    %399 = vmatprep.subr.mxu0 0.0
    %400 = vmatpush1.xpose.msra.mxu0 0.0
    %401 = vmatprep.subr.mxu0 0.0
    %402 = vmatpush1.xpose.msra.mxu0 0.0
    %403 = vmatprep.subr.mxu0 0.0
    %404 = vmatpush1.xpose.msra.mxu0 0.0
    %405 = vmatprep.subr.mxu0 0.0
    %406 = vmatpush1.xpose.msra.mxu0 0.0
    %407 = vmatprep.subr.mxu0 0.0
    %408 = vmatpush1.xpose.msra.mxu0 0.0
    %409 = vmatprep.subr.mxu0 0.0
    %410 = vmatpush1.xpose.msra.mxu0 0.0
    %411 = vmatprep.subr.mxu0 0.0
    %412 = vmatpush1.xpose.msra.mxu0 0.0
    %413 = vmatprep.subr.mxu0 0.0
    %414 = vmatpush1.xpose.msra.mxu0 0.0
    %415 = vmatprep.subr.mxu0 0.0
    %416 = vmatpush1.xpose.msra.mxu0 0.0
    %417 = vmatprep.subr.mxu0 0.0
    %418 = vmatpush1.xpose.msra.mxu0 0.0
    %419 = vmatprep.subr.mxu0 0.0
    %420 = vmatpush1.xpose.msra.mxu0 0.0
    %421 = vmatprep.subr.mxu0 0.0
    %422 = vmatpush1.xpose.msra.mxu0 0.0
    %423 = vmatprep.subr.mxu0 0.0
    %424 = vmatpush1.xpose.msra.mxu0 0.0
    %425 = vmatprep.subr.mxu0 0.0
    %426 = vmatpush1.xpose.msra.mxu0 %v393
    %427 = vmatprep.subr.mxu0 0.0
    %428 = vmatpush2.xpose.msra.mxu0 0.0
    %429 = vmatprep.subr.mxu0 0.0
    %430 = vmatpush2.xpose.msra.mxu0 0.0
    %431 = vmatprep.subr.mxu0 0.0
    %432 = vmatpush2.xpose.msra.mxu0 0.0
    %433 = vmatprep.subr.mxu0 0.0
    %434 = vmatpush2.xpose.msra.mxu0 0.0
    %435 = vmatprep.subr.mxu0 0.0
    %436 = vmatpush2.xpose.msra.mxu0 0.0
    %437 = vmatprep.subr.mxu0 0.0
    %438 = vmatpush2.xpose.msra.mxu0 0.0
    %439 = vmatprep.subr.mxu0 0.0
    %440 = vmatpush2.xpose.msra.mxu0 0.0
    %441 = vmatprep.subr.mxu0 0.0
    %442 = vmatpush2.xpose.msra.mxu0 0.0
    %443 = vmatprep.subr.mxu0 0.0
    %444 = vmatpush2.xpose.msra.mxu0 0.0
    %445 = vmatprep.subr.mxu0 0.0
    %446 = vmatpush2.xpose.msra.mxu0 0.0
    %447 = vmatprep.subr.mxu0 0.0
    %448 = vmatpush2.xpose.msra.mxu0 0.0
    %449 = vmatprep.subr.mxu0 0.0
    %450 = vmatpush2.xpose.msra.mxu0 0.0
    %451 = vmatprep.subr.mxu0 0.0
    %452 = vmatpush2.xpose.msra.mxu0 0.0
    %453 = vmatprep.subr.mxu0 0.0
    %454 = vmatpush2.xpose.msra.mxu0 0.0
    %455 = vmatprep.subr.mxu0 0.0
    %456 = vmatpush2.xpose.msra.mxu0 0.0
    %457 = vmatprep.subr.mxu0 0.0
    %458 = vmatpush2.xpose.msra.mxu0 0.0
    %459 = vmatprep.mubr.f32.mxu0 0.0
    %460 = vmatmul.mubr.f32.gmra.mxu0 %v391
    %v461 = vpop.f32.mrf.mxu0
    %v462 = vadd.f32 0.0, %v461
    %v463 = vpop.f32.mrf.mxu0
    %464 = vdwg.mxu0
    %v465 = vmul.f32 %v462, 0.35355338
    %v466 = vadd.f32 %v465, %v298
    %v467 = vsel %vm219, %v466, -inf
    %468 = vmax.xlane.f32.xlu0 %v467
    %v469 = vpop.xlane.xlu0 %468
    %v470 = vsub.f32 %v466, %v469
    %v471 = vmul.f32 %v470, 1.442695
    %v472 = vpow.pop %v471
    %v473 = vsel %vm219, %v472, 0.0
    %474 = vadd.xlane.f32.xlu0 %v473
    %v475 = vpop.xlane.xlu0 %474
    %v476 = vrcp.pop %v475
    %v477 = vmul.f32 %v472, %v476
    %478 = vrot.lane.b32.xlu0 %v208, 56
    %v479 = vpop.permute.xlu0 %478
    %v482 = vsel %vm219, %v477, 0
    %484 = vmatprep.subr.mxu0 0.0
    %485 = vmatpush1.msra.mxu0 0.0
    %486 = vmatprep.subr.mxu0 0.0
    %487 = vmatpush1.msra.mxu0 0.0
    %488 = vmatprep.subr.mxu0 0.0
    %489 = vmatpush1.msra.mxu0 0.0
    %490 = vmatprep.subr.mxu0 0.0
    %491 = vmatpush1.msra.mxu0 0.0
    %492 = vmatprep.subr.mxu0 0.0
    %493 = vmatpush1.msra.mxu0 0.0
    %494 = vmatprep.subr.mxu0 0.0
    %495 = vmatpush1.msra.mxu0 0.0
    %496 = vmatprep.subr.mxu0 0.0
    %497 = vmatpush1.msra.mxu0 0.0
    %498 = vmatprep.subr.mxu0 0.0
    %499 = vmatpush1.msra.mxu0 0.0
    %500 = vmatprep.subr.mxu0 0.0
    %501 = vmatpush1.msra.mxu0 0.0
    %502 = vmatprep.subr.mxu0 0.0
    %503 = vmatpush1.msra.mxu0 0.0
    %504 = vmatprep.subr.mxu0 0.0
    %505 = vmatpush1.msra.mxu0 0.0
    %506 = vmatprep.subr.mxu0 0.0
    %507 = vmatpush1.msra.mxu0 0.0
    %508 = vmatprep.subr.mxu0 0.0
    %509 = vmatpush1.msra.mxu0 0.0
    %510 = vmatprep.subr.mxu0 0.0
    %511 = vmatpush1.msra.mxu0 0.0
    %512 = vmatprep.subr.mxu0 0.0
    %513 = vmatpush1.msra.mxu0 0.0
    %514 = vmatprep.subr.mxu0 0.0
    %515 = vmatpush1.msra.mxu0 %v479
    %516 = vmatprep.subr.mxu0 0.0
    %517 = vmatpush2.msra.mxu0 0.0
    %518 = vmatprep.subr.mxu0 0.0
    %519 = vmatpush2.msra.mxu0 0.0
    %520 = vmatprep.subr.mxu0 0.0
    %521 = vmatpush2.msra.mxu0 0.0
    %522 = vmatprep.subr.mxu0 0.0
    %523 = vmatpush2.msra.mxu0 0.0
    %524 = vmatprep.subr.mxu0 0.0
    %525 = vmatpush2.msra.mxu0 0.0
    %526 = vmatprep.subr.mxu0 0.0
    %527 = vmatpush2.msra.mxu0 0.0
    %528 = vmatprep.subr.mxu0 0.0
    %529 = vmatpush2.msra.mxu0 0.0
    %530 = vmatprep.subr.mxu0 0.0
    %531 = vmatpush2.msra.mxu0 0.0
    %532 = vmatprep.subr.mxu0 0.0
    %533 = vmatpush2.msra.mxu0 0.0
    %534 = vmatprep.subr.mxu0 0.0
    %535 = vmatpush2.msra.mxu0 0.0
    %536 = vmatprep.subr.mxu0 0.0
    %537 = vmatpush2.msra.mxu0 0.0
    %538 = vmatprep.subr.mxu0 0.0
    %539 = vmatpush2.msra.mxu0 0.0
    %540 = vmatprep.subr.mxu0 0.0
    %541 = vmatpush2.msra.mxu0 0.0
    %542 = vmatprep.subr.mxu0 0.0
    %543 = vmatpush2.msra.mxu0 0.0
    %544 = vmatprep.subr.mxu0 0.0
    %545 = vmatpush2.msra.mxu0 0.0
    %546 = vmatprep.subr.mxu0 0.0
    %547 = vmatpush2.msra.mxu0 0.0
    %548 = vmatprep.mubr.f32.mxu0 0.0
    %549 = vmatmul.mubr.f32.gmra.mxu0 %v482
    %v550 = vpop.f32.mrf.mxu0
    %v551 = vadd.f32 0.0, %v550
    %v552 = vpop.f32.mrf.mxu0
    %553 = vdwg.mxu0
    %554 = vrot.lane.b32.xlu0 %v208, 112
    %v555 = vpop.permute.xlu0 %554
    %556 = vrot.lane.b32.xlu0 %v208, 80
    %v557 = vpop.permute.xlu0 %556
    %v558 = vsel %vm219, %v555, 0
    %v560 = vsel %vm219, %v557, 0
    %562 = vmatprep.subr.mxu0 0.0
    %563 = vmatpush1.xpose.msra.mxu0 0.0
    %564 = vmatprep.subr.mxu0 0.0
    %565 = vmatpush1.xpose.msra.mxu0 0.0
    %566 = vmatprep.subr.mxu0 0.0
    %567 = vmatpush1.xpose.msra.mxu0 0.0
    %568 = vmatprep.subr.mxu0 0.0
    %569 = vmatpush1.xpose.msra.mxu0 0.0
    %570 = vmatprep.subr.mxu0 0.0
    %571 = vmatpush1.xpose.msra.mxu0 0.0
    %572 = vmatprep.subr.mxu0 0.0
    %573 = vmatpush1.xpose.msra.mxu0 0.0
    %574 = vmatprep.subr.mxu0 0.0
    %575 = vmatpush1.xpose.msra.mxu0 0.0
    %576 = vmatprep.subr.mxu0 0.0
    %577 = vmatpush1.xpose.msra.mxu0 0.0
    %578 = vmatprep.subr.mxu0 0.0
    %579 = vmatpush1.xpose.msra.mxu0 0.0
    %580 = vmatprep.subr.mxu0 0.0
    %581 = vmatpush1.xpose.msra.mxu0 0.0
    %582 = vmatprep.subr.mxu0 0.0
    %583 = vmatpush1.xpose.msra.mxu0 0.0
    %584 = vmatprep.subr.mxu0 0.0
    %585 = vmatpush1.xpose.msra.mxu0 0.0
    %586 = vmatprep.subr.mxu0 0.0
    %587 = vmatpush1.xpose.msra.mxu0 0.0
    %588 = vmatprep.subr.mxu0 0.0
    %589 = vmatpush1.xpose.msra.mxu0 0.0
    %590 = vmatprep.subr.mxu0 0.0
    %591 = vmatpush1.xpose.msra.mxu0 0.0
    %592 = vmatprep.subr.mxu0 0.0
    %593 = vmatpush1.xpose.msra.mxu0 %v560
    %594 = vmatprep.subr.mxu0 0.0
    %595 = vmatpush2.xpose.msra.mxu0 0.0
    %596 = vmatprep.subr.mxu0 0.0
    %597 = vmatpush2.xpose.msra.mxu0 0.0
    %598 = vmatprep.subr.mxu0 0.0
    %599 = vmatpush2.xpose.msra.mxu0 0.0
    %600 = vmatprep.subr.mxu0 0.0
    %601 = vmatpush2.xpose.msra.mxu0 0.0
    %602 = vmatprep.subr.mxu0 0.0
    %603 = vmatpush2.xpose.msra.mxu0 0.0
    %604 = vmatprep.subr.mxu0 0.0
    %605 = vmatpush2.xpose.msra.mxu0 0.0
    %606 = vmatprep.subr.mxu0 0.0
    %607 = vmatpush2.xpose.msra.mxu0 0.0
    %608 = vmatprep.subr.mxu0 0.0
    %609 = vmatpush2.xpose.msra.mxu0 0.0
    %610 = vmatprep.subr.mxu0 0.0
    %611 = vmatpush2.xpose.msra.mxu0 0.0
    %612 = vmatprep.subr.mxu0 0.0
    %613 = vmatpush2.xpose.msra.mxu0 0.0
    %614 = vmatprep.subr.mxu0 0.0
    %615 = vmatpush2.xpose.msra.mxu0 0.0
    %616 = vmatprep.subr.mxu0 0.0
    %617 = vmatpush2.xpose.msra.mxu0 0.0
    %618 = vmatprep.subr.mxu0 0.0
    %619 = vmatpush2.xpose.msra.mxu0 0.0
    %620 = vmatprep.subr.mxu0 0.0
    %621 = vmatpush2.xpose.msra.mxu0 0.0
    %622 = vmatprep.subr.mxu0 0.0
    %623 = vmatpush2.xpose.msra.mxu0 0.0
    %624 = vmatprep.subr.mxu0 0.0
    %625 = vmatpush2.xpose.msra.mxu0 0.0
    %626 = vmatprep.mubr.f32.mxu0 0.0
    %627 = vmatmul.mubr.f32.gmra.mxu0 %v558
    %v628 = vpop.f32.mrf.mxu0
    %v629 = vadd.f32 0.0, %v628
    %v630 = vpop.f32.mrf.mxu0
    %631 = vdwg.mxu0
    %v632 = vmul.f32 %v629, 0.35355338
    %v633 = vadd.f32 %v632, %v298
    %v634 = vsel %vm219, %v633, -inf
    %635 = vmax.xlane.f32.xlu0 %v634
    %v636 = vpop.xlane.xlu0 %635
    %v637 = vsub.f32 %v633, %v636
    %v638 = vmul.f32 %v637, 1.442695
    %v639 = vpow.pop %v638
    %v640 = vsel %vm219, %v639, 0.0
    %641 = vadd.xlane.f32.xlu0 %v640
    %v642 = vpop.xlane.xlu0 %641
    %v643 = vrcp.pop %v642
    %v644 = vmul.f32 %v639, %v643
    %645 = vrot.lane.b32.xlu0 %v208, 48
    %v646 = vpop.permute.xlu0 %645
    %v649 = vsel %vm219, %v644, 0
    %651 = vmatprep.subr.mxu0 0.0
    %652 = vmatpush1.msra.mxu0 0.0
    %653 = vmatprep.subr.mxu0 0.0
    %654 = vmatpush1.msra.mxu0 0.0
    %655 = vmatprep.subr.mxu0 0.0
    %656 = vmatpush1.msra.mxu0 0.0
    %657 = vmatprep.subr.mxu0 0.0
    %658 = vmatpush1.msra.mxu0 0.0
    %659 = vmatprep.subr.mxu0 0.0
    %660 = vmatpush1.msra.mxu0 0.0
    %661 = vmatprep.subr.mxu0 0.0
    %662 = vmatpush1.msra.mxu0 0.0
    %663 = vmatprep.subr.mxu0 0.0
    %664 = vmatpush1.msra.mxu0 0.0
    %665 = vmatprep.subr.mxu0 0.0
    %666 = vmatpush1.msra.mxu0 0.0
    %667 = vmatprep.subr.mxu0 0.0
    %668 = vmatpush1.msra.mxu0 0.0
    %669 = vmatprep.subr.mxu0 0.0
    %670 = vmatpush1.msra.mxu0 0.0
    %671 = vmatprep.subr.mxu0 0.0
    %672 = vmatpush1.msra.mxu0 0.0
    %673 = vmatprep.subr.mxu0 0.0
    %674 = vmatpush1.msra.mxu0 0.0
    %675 = vmatprep.subr.mxu0 0.0
    %676 = vmatpush1.msra.mxu0 0.0
    %677 = vmatprep.subr.mxu0 0.0
    %678 = vmatpush1.msra.mxu0 0.0
    %679 = vmatprep.subr.mxu0 0.0
    %680 = vmatpush1.msra.mxu0 0.0
    %681 = vmatprep.subr.mxu0 0.0
    %682 = vmatpush1.msra.mxu0 %v646
    %683 = vmatprep.subr.mxu0 0.0
    %684 = vmatpush2.msra.mxu0 0.0
    %685 = vmatprep.subr.mxu0 0.0
    %686 = vmatpush2.msra.mxu0 0.0
    %687 = vmatprep.subr.mxu0 0.0
    %688 = vmatpush2.msra.mxu0 0.0
    %689 = vmatprep.subr.mxu0 0.0
    %690 = vmatpush2.msra.mxu0 0.0
    %691 = vmatprep.subr.mxu0 0.0
    %692 = vmatpush2.msra.mxu0 0.0
    %693 = vmatprep.subr.mxu0 0.0
    %694 = vmatpush2.msra.mxu0 0.0
    %695 = vmatprep.subr.mxu0 0.0
    %696 = vmatpush2.msra.mxu0 0.0
    %697 = vmatprep.subr.mxu0 0.0
    %698 = vmatpush2.msra.mxu0 0.0
    %699 = vmatprep.subr.mxu0 0.0
    %700 = vmatpush2.msra.mxu0 0.0
    %701 = vmatprep.subr.mxu0 0.0
    %702 = vmatpush2.msra.mxu0 0.0
    %703 = vmatprep.subr.mxu0 0.0
    %704 = vmatpush2.msra.mxu0 0.0
    %705 = vmatprep.subr.mxu0 0.0
    %706 = vmatpush2.msra.mxu0 0.0
    %707 = vmatprep.subr.mxu0 0.0
    %708 = vmatpush2.msra.mxu0 0.0
    %709 = vmatprep.subr.mxu0 0.0
    %710 = vmatpush2.msra.mxu0 0.0
    %711 = vmatprep.subr.mxu0 0.0
    %712 = vmatpush2.msra.mxu0 0.0
    %713 = vmatprep.subr.mxu0 0.0
    %714 = vmatpush2.msra.mxu0 0.0
    %715 = vmatprep.mubr.f32.mxu0 0.0
    %716 = vmatmul.mubr.f32.gmra.mxu0 %v649
    %v717 = vpop.f32.mrf.mxu0
    %v718 = vadd.f32 0.0, %v717
    %v719 = vpop.f32.mrf.mxu0
    %720 = vdwg.mxu0
    %721 = vrot.lane.b32.xlu0 %v208, 104
    %v722 = vpop.permute.xlu0 %721
    %723 = vrot.lane.b32.xlu0 %v208, 72
    %v724 = vpop.permute.xlu0 %723
    %v725 = vsel %vm219, %v722, 0
    %v727 = vsel %vm219, %v724, 0
    %729 = vmatprep.subr.mxu0 0.0
    %730 = vmatpush1.xpose.msra.mxu0 0.0
    %731 = vmatprep.subr.mxu0 0.0
    %732 = vmatpush1.xpose.msra.mxu0 0.0
    %733 = vmatprep.subr.mxu0 0.0
    %734 = vmatpush1.xpose.msra.mxu0 0.0
    %735 = vmatprep.subr.mxu0 0.0
    %736 = vmatpush1.xpose.msra.mxu0 0.0
    %737 = vmatprep.subr.mxu0 0.0
    %738 = vmatpush1.xpose.msra.mxu0 0.0
    %739 = vmatprep.subr.mxu0 0.0
    %740 = vmatpush1.xpose.msra.mxu0 0.0
    %741 = vmatprep.subr.mxu0 0.0
    %742 = vmatpush1.xpose.msra.mxu0 0.0
    %743 = vmatprep.subr.mxu0 0.0
    %744 = vmatpush1.xpose.msra.mxu0 0.0
    %745 = vmatprep.subr.mxu0 0.0
    %746 = vmatpush1.xpose.msra.mxu0 0.0
    %747 = vmatprep.subr.mxu0 0.0
    %748 = vmatpush1.xpose.msra.mxu0 0.0
    %749 = vmatprep.subr.mxu0 0.0
    %750 = vmatpush1.xpose.msra.mxu0 0.0
    %751 = vmatprep.subr.mxu0 0.0
    %752 = vmatpush1.xpose.msra.mxu0 0.0
    %753 = vmatprep.subr.mxu0 0.0
    %754 = vmatpush1.xpose.msra.mxu0 0.0
    %755 = vmatprep.subr.mxu0 0.0
    %756 = vmatpush1.xpose.msra.mxu0 0.0
    %757 = vmatprep.subr.mxu0 0.0
    %758 = vmatpush1.xpose.msra.mxu0 0.0
    %759 = vmatprep.subr.mxu0 0.0
    %760 = vmatpush1.xpose.msra.mxu0 %v727
    %761 = vmatprep.subr.mxu0 0.0
    %762 = vmatpush2.xpose.msra.mxu0 0.0
    %763 = vmatprep.subr.mxu0 0.0
    %764 = vmatpush2.xpose.msra.mxu0 0.0
    %765 = vmatprep.subr.mxu0 0.0
    %766 = vmatpush2.xpose.msra.mxu0 0.0
    %767 = vmatprep.subr.mxu0 0.0
    %768 = vmatpush2.xpose.msra.mxu0 0.0
    %769 = vmatprep.subr.mxu0 0.0
    %770 = vmatpush2.xpose.msra.mxu0 0.0
    %771 = vmatprep.subr.mxu0 0.0
    %772 = vmatpush2.xpose.msra.mxu0 0.0
    %773 = vmatprep.subr.mxu0 0.0
    %774 = vmatpush2.xpose.msra.mxu0 0.0
    %775 = vmatprep.subr.mxu0 0.0
    %776 = vmatpush2.xpose.msra.mxu0 0.0
    %777 = vmatprep.subr.mxu0 0.0
    %778 = vmatpush2.xpose.msra.mxu0 0.0
    %779 = vmatprep.subr.mxu0 0.0
    %780 = vmatpush2.xpose.msra.mxu0 0.0
    %781 = vmatprep.subr.mxu0 0.0
    %782 = vmatpush2.xpose.msra.mxu0 0.0
    %783 = vmatprep.subr.mxu0 0.0
    %784 = vmatpush2.xpose.msra.mxu0 0.0
    %785 = vmatprep.subr.mxu0 0.0
    %786 = vmatpush2.xpose.msra.mxu0 0.0
    %787 = vmatprep.subr.mxu0 0.0
    %788 = vmatpush2.xpose.msra.mxu0 0.0
    %789 = vmatprep.subr.mxu0 0.0
    %790 = vmatpush2.xpose.msra.mxu0 0.0
    %791 = vmatprep.subr.mxu0 0.0
    %792 = vmatpush2.xpose.msra.mxu0 0.0
    %793 = vmatprep.mubr.f32.mxu0 0.0
    %794 = vmatmul.mubr.f32.gmra.mxu0 %v725
    %v795 = vpop.f32.mrf.mxu0
    %v796 = vadd.f32 0.0, %v795
    %v797 = vpop.f32.mrf.mxu0
    %798 = vdwg.mxu0
    %v799 = vmul.f32 %v796, 0.35355338
    %v800 = vadd.f32 %v799, %v298
    %v801 = vsel %vm219, %v800, -inf
    %802 = vmax.xlane.f32.xlu0 %v801
    %v803 = vpop.xlane.xlu0 %802
    %v804 = vsub.f32 %v800, %v803
    %v805 = vmul.f32 %v804, 1.442695
    %v806 = vpow.pop %v805
    %v807 = vsel %vm219, %v806, 0.0
    %808 = vadd.xlane.f32.xlu0 %v807
    %v809 = vpop.xlane.xlu0 %808
    %v810 = vrcp.pop %v809
    %v811 = vmul.f32 %v806, %v810
    %812 = vrot.lane.b32.xlu0 %v208, 40
    %v813 = vpop.permute.xlu0 %812
    %v816 = vsel %vm219, %v811, 0
    %818 = vmatprep.subr.mxu0 0.0
    %819 = vmatpush1.msra.mxu0 0.0
    %820 = vmatprep.subr.mxu0 0.0
    %821 = vmatpush1.msra.mxu0 0.0
    %822 = vmatprep.subr.mxu0 0.0
    %823 = vmatpush1.msra.mxu0 0.0
    %824 = vmatprep.subr.mxu0 0.0
    %825 = vmatpush1.msra.mxu0 0.0
    %826 = vmatprep.subr.mxu0 0.0
    %827 = vmatpush1.msra.mxu0 0.0
    %828 = vmatprep.subr.mxu0 0.0
    %829 = vmatpush1.msra.mxu0 0.0
    %830 = vmatprep.subr.mxu0 0.0
    %831 = vmatpush1.msra.mxu0 0.0
    %832 = vmatprep.subr.mxu0 0.0
    %833 = vmatpush1.msra.mxu0 0.0
    %834 = vmatprep.subr.mxu0 0.0
    %835 = vmatpush1.msra.mxu0 0.0
    %836 = vmatprep.subr.mxu0 0.0
    %837 = vmatpush1.msra.mxu0 0.0
    %838 = vmatprep.subr.mxu0 0.0
    %839 = vmatpush1.msra.mxu0 0.0
    %840 = vmatprep.subr.mxu0 0.0
    %841 = vmatpush1.msra.mxu0 0.0
    %842 = vmatprep.subr.mxu0 0.0
    %843 = vmatpush1.msra.mxu0 0.0
    %844 = vmatprep.subr.mxu0 0.0
    %845 = vmatpush1.msra.mxu0 0.0
    %846 = vmatprep.subr.mxu0 0.0
    %847 = vmatpush1.msra.mxu0 0.0
    %848 = vmatprep.subr.mxu0 0.0
    %849 = vmatpush1.msra.mxu0 %v813
    %850 = vmatprep.subr.mxu0 0.0
    %851 = vmatpush2.msra.mxu0 0.0
    %852 = vmatprep.subr.mxu0 0.0
    %853 = vmatpush2.msra.mxu0 0.0
    %854 = vmatprep.subr.mxu0 0.0
    %855 = vmatpush2.msra.mxu0 0.0
    %856 = vmatprep.subr.mxu0 0.0
    %857 = vmatpush2.msra.mxu0 0.0
    %858 = vmatprep.subr.mxu0 0.0
    %859 = vmatpush2.msra.mxu0 0.0
    %860 = vmatprep.subr.mxu0 0.0
    %861 = vmatpush2.msra.mxu0 0.0
    %862 = vmatprep.subr.mxu0 0.0
    %863 = vmatpush2.msra.mxu0 0.0
    %864 = vmatprep.subr.mxu0 0.0
    %865 = vmatpush2.msra.mxu0 0.0
    %866 = vmatprep.subr.mxu0 0.0
    %867 = vmatpush2.msra.mxu0 0.0
    %868 = vmatprep.subr.mxu0 0.0
    %869 = vmatpush2.msra.mxu0 0.0
    %870 = vmatprep.subr.mxu0 0.0
    %871 = vmatpush2.msra.mxu0 0.0
    %872 = vmatprep.subr.mxu0 0.0
    %873 = vmatpush2.msra.mxu0 0.0
    %874 = vmatprep.subr.mxu0 0.0
    %875 = vmatpush2.msra.mxu0 0.0
    %876 = vmatprep.subr.mxu0 0.0
    %877 = vmatpush2.msra.mxu0 0.0
    %878 = vmatprep.subr.mxu0 0.0
    %879 = vmatpush2.msra.mxu0 0.0
    %880 = vmatprep.subr.mxu0 0.0
    %881 = vmatpush2.msra.mxu0 0.0
    %882 = vmatprep.mubr.f32.mxu0 0.0
    %883 = vmatmul.mubr.f32.gmra.mxu0 %v816
    %v884 = vpop.f32.mrf.mxu0
    %v885 = vadd.f32 0.0, %v884
    %v886 = vpop.f32.mrf.mxu0
    %887 = vdwg.mxu0
    %889 = vrot.lane.b32.xlu0 %v551, 8
    %v890 = vpop.permute.xlu0 %889
    %893 = vrot.lane.b32.xlu0 %v718, 16
    %v894 = vpop.permute.xlu0 %893
    %897 = vrot.lane.b32.xlu0 %v885, 24
    %v898 = vpop.permute.xlu0 %897
    %v900 = vsel %vm219, %v384, %v890
    %vm901 = vcmask 130048
    %v902 = vsel %vm901, %v900, %v894
    %vm903 = vcmask 195584
    %v904 = vsel %vm903, %v902, %v898
    %906 = vrot.lane.b32.xlu0 %v213, 96
    %v907 = vpop.permute.xlu0 %906
    %v908 = vsel %vm219, %v213, 0
    %v910 = vsel %vm219, %v907, 0
    %912 = vmatprep.subr.mxu0 0.0
    %913 = vmatpush1.xpose.msra.mxu0 0.0
    %914 = vmatprep.subr.mxu0 0.0
    %915 = vmatpush1.xpose.msra.mxu0 0.0
    %916 = vmatprep.subr.mxu0 0.0
    %917 = vmatpush1.xpose.msra.mxu0 0.0
    %918 = vmatprep.subr.mxu0 0.0
    %919 = vmatpush1.xpose.msra.mxu0 0.0
    %920 = vmatprep.subr.mxu0 0.0
    %921 = vmatpush1.xpose.msra.mxu0 0.0
    %922 = vmatprep.subr.mxu0 0.0
    %923 = vmatpush1.xpose.msra.mxu0 0.0
    %924 = vmatprep.subr.mxu0 0.0
    %925 = vmatpush1.xpose.msra.mxu0 0.0
    %926 = vmatprep.subr.mxu0 0.0
    %927 = vmatpush1.xpose.msra.mxu0 0.0
    %928 = vmatprep.subr.mxu0 0.0
    %929 = vmatpush1.xpose.msra.mxu0 0.0
    %930 = vmatprep.subr.mxu0 0.0
    %931 = vmatpush1.xpose.msra.mxu0 0.0
    %932 = vmatprep.subr.mxu0 0.0
    %933 = vmatpush1.xpose.msra.mxu0 0.0
    %934 = vmatprep.subr.mxu0 0.0
    %935 = vmatpush1.xpose.msra.mxu0 0.0
    %936 = vmatprep.subr.mxu0 0.0
    %937 = vmatpush1.xpose.msra.mxu0 0.0
    %938 = vmatprep.subr.mxu0 0.0
    %939 = vmatpush1.xpose.msra.mxu0 0.0
    %940 = vmatprep.subr.mxu0 0.0
    %941 = vmatpush1.xpose.msra.mxu0 0.0
    %942 = vmatprep.subr.mxu0 0.0
    %943 = vmatpush1.xpose.msra.mxu0 %v910
    %944 = vmatprep.subr.mxu0 0.0
    %945 = vmatpush2.xpose.msra.mxu0 0.0
    %946 = vmatprep.subr.mxu0 0.0
    %947 = vmatpush2.xpose.msra.mxu0 0.0
    %948 = vmatprep.subr.mxu0 0.0
    %949 = vmatpush2.xpose.msra.mxu0 0.0
    %950 = vmatprep.subr.mxu0 0.0
    %951 = vmatpush2.xpose.msra.mxu0 0.0
    %952 = vmatprep.subr.mxu0 0.0
    %953 = vmatpush2.xpose.msra.mxu0 0.0
    %954 = vmatprep.subr.mxu0 0.0
    %955 = vmatpush2.xpose.msra.mxu0 0.0
    %956 = vmatprep.subr.mxu0 0.0
    %957 = vmatpush2.xpose.msra.mxu0 0.0
    %958 = vmatprep.subr.mxu0 0.0
    %959 = vmatpush2.xpose.msra.mxu0 0.0
    %960 = vmatprep.subr.mxu0 0.0
    %961 = vmatpush2.xpose.msra.mxu0 0.0
    %962 = vmatprep.subr.mxu0 0.0
    %963 = vmatpush2.xpose.msra.mxu0 0.0
    %964 = vmatprep.subr.mxu0 0.0
    %965 = vmatpush2.xpose.msra.mxu0 0.0
    %966 = vmatprep.subr.mxu0 0.0
    %967 = vmatpush2.xpose.msra.mxu0 0.0
    %968 = vmatprep.subr.mxu0 0.0
    %969 = vmatpush2.xpose.msra.mxu0 0.0
    %970 = vmatprep.subr.mxu0 0.0
    %971 = vmatpush2.xpose.msra.mxu0 0.0
    %972 = vmatprep.subr.mxu0 0.0
    %973 = vmatpush2.xpose.msra.mxu0 0.0
    %974 = vmatprep.subr.mxu0 0.0
    %975 = vmatpush2.xpose.msra.mxu0 0.0
    %976 = vmatprep.mubr.f32.mxu0 0.0
    %977 = vmatmul.mubr.f32.gmra.mxu0 %v908
    %v978 = vpop.f32.mrf.mxu0
    %v979 = vadd.f32 0.0, %v978
    %v980 = vpop.f32.mrf.mxu0
    %981 = vdwg.mxu0
    %v982 = vmul.f32 %v979, 0.35355338
    %v983 = vlaneseq
    %v984 = vshrl.u32 %v983, 7
    %v985 = vsub.s32 1, %v984
    %v986 = vrot.slane %v69, %v985
    %v987 = vadd.f32 %v982, %v986
    %v988 = vsel %vm219, %v987, -inf
    %989 = vmax.xlane.f32.xlu0 %v988
    %v990 = vpop.xlane.xlu0 %989
    %v991 = vsub.f32 %v987, %v990
    %v992 = vmul.f32 %v991, 1.442695
    %v993 = vpow.pop %v992
    %v994 = vsel %vm219, %v993, 0.0
    %995 = vadd.xlane.f32.xlu0 %v994
    %v996 = vpop.xlane.xlu0 %995
    %v997 = vrcp.pop %v996
    %v998 = vmul.f32 %v993, %v997
    %999 = vrot.lane.b32.xlu0 %v213, 64
    %v1000 = vpop.permute.xlu0 %999
    %v1003 = vsel %vm219, %v998, 0
    %1005 = vmatprep.subr.mxu0 0.0
    %1006 = vmatpush1.msra.mxu0 0.0
    %1007 = vmatprep.subr.mxu0 0.0
    %1008 = vmatpush1.msra.mxu0 0.0
    %1009 = vmatprep.subr.mxu0 0.0
    %1010 = vmatpush1.msra.mxu0 0.0
    %1011 = vmatprep.subr.mxu0 0.0
    %1012 = vmatpush1.msra.mxu0 0.0
    %1013 = vmatprep.subr.mxu0 0.0
    %1014 = vmatpush1.msra.mxu0 0.0
    %1015 = vmatprep.subr.mxu0 0.0
    %1016 = vmatpush1.msra.mxu0 0.0
    %1017 = vmatprep.subr.mxu0 0.0
    %1018 = vmatpush1.msra.mxu0 0.0
    %1019 = vmatprep.subr.mxu0 0.0
    %1020 = vmatpush1.msra.mxu0 0.0
    %1021 = vmatprep.subr.mxu0 0.0
    %1022 = vmatpush1.msra.mxu0 0.0
    %1023 = vmatprep.subr.mxu0 0.0
    %1024 = vmatpush1.msra.mxu0 0.0
    %1025 = vmatprep.subr.mxu0 0.0
    %1026 = vmatpush1.msra.mxu0 0.0
    %1027 = vmatprep.subr.mxu0 0.0
    %1028 = vmatpush1.msra.mxu0 0.0
    %1029 = vmatprep.subr.mxu0 0.0
    %1030 = vmatpush1.msra.mxu0 0.0
    %1031 = vmatprep.subr.mxu0 0.0
    %1032 = vmatpush1.msra.mxu0 0.0
    %1033 = vmatprep.subr.mxu0 0.0
    %1034 = vmatpush1.msra.mxu0 0.0
    %1035 = vmatprep.subr.mxu0 0.0
    %1036 = vmatpush1.msra.mxu0 %v1000
    %1037 = vmatprep.subr.mxu0 0.0
    %1038 = vmatpush2.msra.mxu0 0.0
    %1039 = vmatprep.subr.mxu0 0.0
    %1040 = vmatpush2.msra.mxu0 0.0
    %1041 = vmatprep.subr.mxu0 0.0
    %1042 = vmatpush2.msra.mxu0 0.0
    %1043 = vmatprep.subr.mxu0 0.0
    %1044 = vmatpush2.msra.mxu0 0.0
    %1045 = vmatprep.subr.mxu0 0.0
    %1046 = vmatpush2.msra.mxu0 0.0
    %1047 = vmatprep.subr.mxu0 0.0
    %1048 = vmatpush2.msra.mxu0 0.0
    %1049 = vmatprep.subr.mxu0 0.0
    %1050 = vmatpush2.msra.mxu0 0.0
    %1051 = vmatprep.subr.mxu0 0.0
    %1052 = vmatpush2.msra.mxu0 0.0
    %1053 = vmatprep.subr.mxu0 0.0
    %1054 = vmatpush2.msra.mxu0 0.0
    %1055 = vmatprep.subr.mxu0 0.0
    %1056 = vmatpush2.msra.mxu0 0.0
    %1057 = vmatprep.subr.mxu0 0.0
    %1058 = vmatpush2.msra.mxu0 0.0
    %1059 = vmatprep.subr.mxu0 0.0
    %1060 = vmatpush2.msra.mxu0 0.0
    %1061 = vmatprep.subr.mxu0 0.0
    %1062 = vmatpush2.msra.mxu0 0.0
    %1063 = vmatprep.subr.mxu0 0.0
    %1064 = vmatpush2.msra.mxu0 0.0
    %1065 = vmatprep.subr.mxu0 0.0
    %1066 = vmatpush2.msra.mxu0 0.0
    %1067 = vmatprep.subr.mxu0 0.0
    %1068 = vmatpush2.msra.mxu0 0.0
    %1069 = vmatprep.mubr.f32.mxu0 0.0
    %1070 = vmatmul.mubr.f32.gmra.mxu0 %v1003
    %v1071 = vpop.f32.mrf.mxu0
    %v1072 = vadd.f32 0.0, %v1071
    %v1073 = vpop.f32.mrf.mxu0
    %1074 = vdwg.mxu0
    %1075 = vrot.lane.b32.xlu0 %v213, 120
    %v1076 = vpop.permute.xlu0 %1075
    %1077 = vrot.lane.b32.xlu0 %v213, 88
    %v1078 = vpop.permute.xlu0 %1077
    %v1079 = vsel %vm219, %v1076, 0
    %v1081 = vsel %vm219, %v1078, 0
    %1083 = vmatprep.subr.mxu0 0.0
    %1084 = vmatpush1.xpose.msra.mxu0 0.0
    %1085 = vmatprep.subr.mxu0 0.0
    %1086 = vmatpush1.xpose.msra.mxu0 0.0
    %1087 = vmatprep.subr.mxu0 0.0
    %1088 = vmatpush1.xpose.msra.mxu0 0.0
    %1089 = vmatprep.subr.mxu0 0.0
    %1090 = vmatpush1.xpose.msra.mxu0 0.0
    %1091 = vmatprep.subr.mxu0 0.0
    %1092 = vmatpush1.xpose.msra.mxu0 0.0
    %1093 = vmatprep.subr.mxu0 0.0
    %1094 = vmatpush1.xpose.msra.mxu0 0.0
    %1095 = vmatprep.subr.mxu0 0.0
    %1096 = vmatpush1.xpose.msra.mxu0 0.0
    %1097 = vmatprep.subr.mxu0 0.0
    %1098 = vmatpush1.xpose.msra.mxu0 0.0
    %1099 = vmatprep.subr.mxu0 0.0
    %1100 = vmatpush1.xpose.msra.mxu0 0.0
    %1101 = vmatprep.subr.mxu0 0.0
    %1102 = vmatpush1.xpose.msra.mxu0 0.0
    %1103 = vmatprep.subr.mxu0 0.0
    %1104 = vmatpush1.xpose.msra.mxu0 0.0
    %1105 = vmatprep.subr.mxu0 0.0
    %1106 = vmatpush1.xpose.msra.mxu0 0.0
    %1107 = vmatprep.subr.mxu0 0.0
    %1108 = vmatpush1.xpose.msra.mxu0 0.0
    %1109 = vmatprep.subr.mxu0 0.0
    %1110 = vmatpush1.xpose.msra.mxu0 0.0
    %1111 = vmatprep.subr.mxu0 0.0
    %1112 = vmatpush1.xpose.msra.mxu0 0.0
    %1113 = vmatprep.subr.mxu0 0.0
    %1114 = vmatpush1.xpose.msra.mxu0 %v1081
    %1115 = vmatprep.subr.mxu0 0.0
    %1116 = vmatpush2.xpose.msra.mxu0 0.0
    %1117 = vmatprep.subr.mxu0 0.0
    %1118 = vmatpush2.xpose.msra.mxu0 0.0
    %1119 = vmatprep.subr.mxu0 0.0
    %1120 = vmatpush2.xpose.msra.mxu0 0.0
    %1121 = vmatprep.subr.mxu0 0.0
    %1122 = vmatpush2.xpose.msra.mxu0 0.0
    %1123 = vmatprep.subr.mxu0 0.0
    %1124 = vmatpush2.xpose.msra.mxu0 0.0
    %1125 = vmatprep.subr.mxu0 0.0
    %1126 = vmatpush2.xpose.msra.mxu0 0.0
    %1127 = vmatprep.subr.mxu0 0.0
    %1128 = vmatpush2.xpose.msra.mxu0 0.0
    %1129 = vmatprep.subr.mxu0 0.0
    %1130 = vmatpush2.xpose.msra.mxu0 0.0
    %1131 = vmatprep.subr.mxu0 0.0
    %1132 = vmatpush2.xpose.msra.mxu0 0.0
    %1133 = vmatprep.subr.mxu0 0.0
    %1134 = vmatpush2.xpose.msra.mxu0 0.0
    %1135 = vmatprep.subr.mxu0 0.0
    %1136 = vmatpush2.xpose.msra.mxu0 0.0
    %1137 = vmatprep.subr.mxu0 0.0
    %1138 = vmatpush2.xpose.msra.mxu0 0.0
    %1139 = vmatprep.subr.mxu0 0.0
    %1140 = vmatpush2.xpose.msra.mxu0 0.0
    %1141 = vmatprep.subr.mxu0 0.0
    %1142 = vmatpush2.xpose.msra.mxu0 0.0
    %1143 = vmatprep.subr.mxu0 0.0
    %1144 = vmatpush2.xpose.msra.mxu0 0.0
    %1145 = vmatprep.subr.mxu0 0.0
    %1146 = vmatpush2.xpose.msra.mxu0 0.0
    %1147 = vmatprep.mubr.f32.mxu0 0.0
    %1148 = vmatmul.mubr.f32.gmra.mxu0 %v1079
    %v1149 = vpop.f32.mrf.mxu0
    %v1150 = vadd.f32 0.0, %v1149
    %v1151 = vpop.f32.mrf.mxu0
    %1152 = vdwg.mxu0
    %v1153 = vmul.f32 %v1150, 0.35355338
    %v1154 = vadd.f32 %v1153, %v986
    %v1155 = vsel %vm219, %v1154, -inf
    %1156 = vmax.xlane.f32.xlu0 %v1155
    %v1157 = vpop.xlane.xlu0 %1156
    %v1158 = vsub.f32 %v1154, %v1157
    %v1159 = vmul.f32 %v1158, 1.442695
    %v1160 = vpow.pop %v1159
    %v1161 = vsel %vm219, %v1160, 0.0
    %1162 = vadd.xlane.f32.xlu0 %v1161
    %v1163 = vpop.xlane.xlu0 %1162
    %v1164 = vrcp.pop %v1163
    %v1165 = vmul.f32 %v1160, %v1164
    %1166 = vrot.lane.b32.xlu0 %v213, 56
    %v1167 = vpop.permute.xlu0 %1166
    %v1170 = vsel %vm219, %v1165, 0
    %1172 = vmatprep.subr.mxu0 0.0
    %1173 = vmatpush1.msra.mxu0 0.0
    %1174 = vmatprep.subr.mxu0 0.0
    %1175 = vmatpush1.msra.mxu0 0.0
    %1176 = vmatprep.subr.mxu0 0.0
    %1177 = vmatpush1.msra.mxu0 0.0
    %1178 = vmatprep.subr.mxu0 0.0
    %1179 = vmatpush1.msra.mxu0 0.0
    %1180 = vmatprep.subr.mxu0 0.0
    %1181 = vmatpush1.msra.mxu0 0.0
    %1182 = vmatprep.subr.mxu0 0.0
    %1183 = vmatpush1.msra.mxu0 0.0
    %1184 = vmatprep.subr.mxu0 0.0
    %1185 = vmatpush1.msra.mxu0 0.0
    %1186 = vmatprep.subr.mxu0 0.0
    %1187 = vmatpush1.msra.mxu0 0.0
    %1188 = vmatprep.subr.mxu0 0.0
    %1189 = vmatpush1.msra.mxu0 0.0
    %1190 = vmatprep.subr.mxu0 0.0
    %1191 = vmatpush1.msra.mxu0 0.0
    %1192 = vmatprep.subr.mxu0 0.0
    %1193 = vmatpush1.msra.mxu0 0.0
    %1194 = vmatprep.subr.mxu0 0.0
    %1195 = vmatpush1.msra.mxu0 0.0
    %1196 = vmatprep.subr.mxu0 0.0
    %1197 = vmatpush1.msra.mxu0 0.0
    %1198 = vmatprep.subr.mxu0 0.0
    %1199 = vmatpush1.msra.mxu0 0.0
    %1200 = vmatprep.subr.mxu0 0.0
    %1201 = vmatpush1.msra.mxu0 0.0
    %1202 = vmatprep.subr.mxu0 0.0
    %1203 = vmatpush1.msra.mxu0 %v1167
    %1204 = vmatprep.subr.mxu0 0.0
    %1205 = vmatpush2.msra.mxu0 0.0
    %1206 = vmatprep.subr.mxu0 0.0
    %1207 = vmatpush2.msra.mxu0 0.0
    %1208 = vmatprep.subr.mxu0 0.0
    %1209 = vmatpush2.msra.mxu0 0.0
    %1210 = vmatprep.subr.mxu0 0.0
    %1211 = vmatpush2.msra.mxu0 0.0
    %1212 = vmatprep.subr.mxu0 0.0
    %1213 = vmatpush2.msra.mxu0 0.0
    %1214 = vmatprep.subr.mxu0 0.0
    %1215 = vmatpush2.msra.mxu0 0.0
    %1216 = vmatprep.subr.mxu0 0.0
    %1217 = vmatpush2.msra.mxu0 0.0
    %1218 = vmatprep.subr.mxu0 0.0
    %1219 = vmatpush2.msra.mxu0 0.0
    %1220 = vmatprep.subr.mxu0 0.0
    %1221 = vmatpush2.msra.mxu0 0.0
    %1222 = vmatprep.subr.mxu0 0.0
    %1223 = vmatpush2.msra.mxu0 0.0
    %1224 = vmatprep.subr.mxu0 0.0
    %1225 = vmatpush2.msra.mxu0 0.0
    %1226 = vmatprep.subr.mxu0 0.0
    %1227 = vmatpush2.msra.mxu0 0.0
    %1228 = vmatprep.subr.mxu0 0.0
    %1229 = vmatpush2.msra.mxu0 0.0
    %1230 = vmatprep.subr.mxu0 0.0
    %1231 = vmatpush2.msra.mxu0 0.0
    %1232 = vmatprep.subr.mxu0 0.0
    %1233 = vmatpush2.msra.mxu0 0.0
    %1234 = vmatprep.subr.mxu0 0.0
    %1235 = vmatpush2.msra.mxu0 0.0
    %1236 = vmatprep.mubr.f32.mxu0 0.0
    %1237 = vmatmul.mubr.f32.gmra.mxu0 %v1170
    %v1238 = vpop.f32.mrf.mxu0
    %v1239 = vadd.f32 0.0, %v1238
    %v1240 = vpop.f32.mrf.mxu0
    %1241 = vdwg.mxu0
    %1242 = vrot.lane.b32.xlu0 %v213, 112
    %v1243 = vpop.permute.xlu0 %1242
    %1244 = vrot.lane.b32.xlu0 %v213, 80
    %v1245 = vpop.permute.xlu0 %1244
    %v1246 = vsel %vm219, %v1243, 0
    %v1248 = vsel %vm219, %v1245, 0
    %1250 = vmatprep.subr.mxu0 0.0
    %1251 = vmatpush1.xpose.msra.mxu0 0.0
    %1252 = vmatprep.subr.mxu0 0.0
    %1253 = vmatpush1.xpose.msra.mxu0 0.0
    %1254 = vmatprep.subr.mxu0 0.0
    %1255 = vmatpush1.xpose.msra.mxu0 0.0
    %1256 = vmatprep.subr.mxu0 0.0
    %1257 = vmatpush1.xpose.msra.mxu0 0.0
    %1258 = vmatprep.subr.mxu0 0.0
    %1259 = vmatpush1.xpose.msra.mxu0 0.0
    %1260 = vmatprep.subr.mxu0 0.0
    %1261 = vmatpush1.xpose.msra.mxu0 0.0
    %1262 = vmatprep.subr.mxu0 0.0
    %1263 = vmatpush1.xpose.msra.mxu0 0.0
    %1264 = vmatprep.subr.mxu0 0.0
    %1265 = vmatpush1.xpose.msra.mxu0 0.0
    %1266 = vmatprep.subr.mxu0 0.0
    %1267 = vmatpush1.xpose.msra.mxu0 0.0
    %1268 = vmatprep.subr.mxu0 0.0
    %1269 = vmatpush1.xpose.msra.mxu0 0.0
    %1270 = vmatprep.subr.mxu0 0.0
    %1271 = vmatpush1.xpose.msra.mxu0 0.0
    %1272 = vmatprep.subr.mxu0 0.0
    %1273 = vmatpush1.xpose.msra.mxu0 0.0
    %1274 = vmatprep.subr.mxu0 0.0
    %1275 = vmatpush1.xpose.msra.mxu0 0.0
    %1276 = vmatprep.subr.mxu0 0.0
    %1277 = vmatpush1.xpose.msra.mxu0 0.0
    %1278 = vmatprep.subr.mxu0 0.0
    %1279 = vmatpush1.xpose.msra.mxu0 0.0
    %1280 = vmatprep.subr.mxu0 0.0
    %1281 = vmatpush1.xpose.msra.mxu0 %v1248
    %1282 = vmatprep.subr.mxu0 0.0
    %1283 = vmatpush2.xpose.msra.mxu0 0.0
    %1284 = vmatprep.subr.mxu0 0.0
    %1285 = vmatpush2.xpose.msra.mxu0 0.0
    %1286 = vmatprep.subr.mxu0 0.0
    %1287 = vmatpush2.xpose.msra.mxu0 0.0
    %1288 = vmatprep.subr.mxu0 0.0
    %1289 = vmatpush2.xpose.msra.mxu0 0.0
    %1290 = vmatprep.subr.mxu0 0.0
    %1291 = vmatpush2.xpose.msra.mxu0 0.0
    %1292 = vmatprep.subr.mxu0 0.0
    %1293 = vmatpush2.xpose.msra.mxu0 0.0
    %1294 = vmatprep.subr.mxu0 0.0
    %1295 = vmatpush2.xpose.msra.mxu0 0.0
    %1296 = vmatprep.subr.mxu0 0.0
    %1297 = vmatpush2.xpose.msra.mxu0 0.0
    %1298 = vmatprep.subr.mxu0 0.0
    %1299 = vmatpush2.xpose.msra.mxu0 0.0
    %1300 = vmatprep.subr.mxu0 0.0
    %1301 = vmatpush2.xpose.msra.mxu0 0.0
    %1302 = vmatprep.subr.mxu0 0.0
    %1303 = vmatpush2.xpose.msra.mxu0 0.0
    %1304 = vmatprep.subr.mxu0 0.0
    %1305 = vmatpush2.xpose.msra.mxu0 0.0
    %1306 = vmatprep.subr.mxu0 0.0
    %1307 = vmatpush2.xpose.msra.mxu0 0.0
    %1308 = vmatprep.subr.mxu0 0.0
    %1309 = vmatpush2.xpose.msra.mxu0 0.0
    %1310 = vmatprep.subr.mxu0 0.0
    %1311 = vmatpush2.xpose.msra.mxu0 0.0
    %1312 = vmatprep.subr.mxu0 0.0
    %1313 = vmatpush2.xpose.msra.mxu0 0.0
    %1314 = vmatprep.mubr.f32.mxu0 0.0
    %1315 = vmatmul.mubr.f32.gmra.mxu0 %v1246
    %v1316 = vpop.f32.mrf.mxu0
    %v1317 = vadd.f32 0.0, %v1316
    %v1318 = vpop.f32.mrf.mxu0
    %1319 = vdwg.mxu0
    %v1320 = vmul.f32 %v1317, 0.35355338
    %v1321 = vadd.f32 %v1320, %v986
    %v1322 = vsel %vm219, %v1321, -inf
    %1323 = vmax.xlane.f32.xlu0 %v1322
    %v1324 = vpop.xlane.xlu0 %1323
    %v1325 = vsub.f32 %v1321, %v1324
    %v1326 = vmul.f32 %v1325, 1.442695
    %v1327 = vpow.pop %v1326
    %v1328 = vsel %vm219, %v1327, 0.0
    %1329 = vadd.xlane.f32.xlu0 %v1328
    %v1330 = vpop.xlane.xlu0 %1329
    %v1331 = vrcp.pop %v1330
    %v1332 = vmul.f32 %v1327, %v1331
    %1333 = vrot.lane.b32.xlu0 %v213, 48
    %v1334 = vpop.permute.xlu0 %1333
    %v1337 = vsel %vm219, %v1332, 0
    %1339 = vmatprep.subr.mxu0 0.0
    %1340 = vmatpush1.msra.mxu0 0.0
    %1341 = vmatprep.subr.mxu0 0.0
    %1342 = vmatpush1.msra.mxu0 0.0
    %1343 = vmatprep.subr.mxu0 0.0
    %1344 = vmatpush1.msra.mxu0 0.0
    %1345 = vmatprep.subr.mxu0 0.0
    %1346 = vmatpush1.msra.mxu0 0.0
    %1347 = vmatprep.subr.mxu0 0.0
    %1348 = vmatpush1.msra.mxu0 0.0
    %1349 = vmatprep.subr.mxu0 0.0
    %1350 = vmatpush1.msra.mxu0 0.0
    %1351 = vmatprep.subr.mxu0 0.0
    %1352 = vmatpush1.msra.mxu0 0.0
    %1353 = vmatprep.subr.mxu0 0.0
    %1354 = vmatpush1.msra.mxu0 0.0
    %1355 = vmatprep.subr.mxu0 0.0
    %1356 = vmatpush1.msra.mxu0 0.0
    %1357 = vmatprep.subr.mxu0 0.0
    %1358 = vmatpush1.msra.mxu0 0.0
    %1359 = vmatprep.subr.mxu0 0.0
    %1360 = vmatpush1.msra.mxu0 0.0
    %1361 = vmatprep.subr.mxu0 0.0
    %1362 = vmatpush1.msra.mxu0 0.0
    %1363 = vmatprep.subr.mxu0 0.0
    %1364 = vmatpush1.msra.mxu0 0.0
    %1365 = vmatprep.subr.mxu0 0.0
    %1366 = vmatpush1.msra.mxu0 0.0
    %1367 = vmatprep.subr.mxu0 0.0
    %1368 = vmatpush1.msra.mxu0 0.0
    %1369 = vmatprep.subr.mxu0 0.0
    %1370 = vmatpush1.msra.mxu0 %v1334
    %1371 = vmatprep.subr.mxu0 0.0
    %1372 = vmatpush2.msra.mxu0 0.0
    %1373 = vmatprep.subr.mxu0 0.0
    %1374 = vmatpush2.msra.mxu0 0.0
    %1375 = vmatprep.subr.mxu0 0.0
    %1376 = vmatpush2.msra.mxu0 0.0
    %1377 = vmatprep.subr.mxu0 0.0
    %1378 = vmatpush2.msra.mxu0 0.0
    %1379 = vmatprep.subr.mxu0 0.0
    %1380 = vmatpush2.msra.mxu0 0.0
    %1381 = vmatprep.subr.mxu0 0.0
    %1382 = vmatpush2.msra.mxu0 0.0
    %1383 = vmatprep.subr.mxu0 0.0
    %1384 = vmatpush2.msra.mxu0 0.0
    %1385 = vmatprep.subr.mxu0 0.0
    %1386 = vmatpush2.msra.mxu0 0.0
    %1387 = vmatprep.subr.mxu0 0.0
    %1388 = vmatpush2.msra.mxu0 0.0
    %1389 = vmatprep.subr.mxu0 0.0
    %1390 = vmatpush2.msra.mxu0 0.0
    %1391 = vmatprep.subr.mxu0 0.0
    %1392 = vmatpush2.msra.mxu0 0.0
    %1393 = vmatprep.subr.mxu0 0.0
    %1394 = vmatpush2.msra.mxu0 0.0
    %1395 = vmatprep.subr.mxu0 0.0
    %1396 = vmatpush2.msra.mxu0 0.0
    %1397 = vmatprep.subr.mxu0 0.0
    %1398 = vmatpush2.msra.mxu0 0.0
    %1399 = vmatprep.subr.mxu0 0.0
    %1400 = vmatpush2.msra.mxu0 0.0
    %1401 = vmatprep.subr.mxu0 0.0
    %1402 = vmatpush2.msra.mxu0 0.0
    %1403 = vmatprep.mubr.f32.mxu0 0.0
    %1404 = vmatmul.mubr.f32.gmra.mxu0 %v1337
    %v1405 = vpop.f32.mrf.mxu0
    %v1406 = vadd.f32 0.0, %v1405
    %v1407 = vpop.f32.mrf.mxu0
    %1408 = vdwg.mxu0
    %1409 = vrot.lane.b32.xlu0 %v213, 104
    %v1410 = vpop.permute.xlu0 %1409
    %1411 = vrot.lane.b32.xlu0 %v213, 72
    %v1412 = vpop.permute.xlu0 %1411
    %v1413 = vsel %vm219, %v1410, 0
    %v1415 = vsel %vm219, %v1412, 0
    %1417 = vmatprep.subr.mxu0 0.0
    %1418 = vmatpush1.xpose.msra.mxu0 0.0
    %1419 = vmatprep.subr.mxu0 0.0
    %1420 = vmatpush1.xpose.msra.mxu0 0.0
    %1421 = vmatprep.subr.mxu0 0.0
    %1422 = vmatpush1.xpose.msra.mxu0 0.0
    %1423 = vmatprep.subr.mxu0 0.0
    %1424 = vmatpush1.xpose.msra.mxu0 0.0
    %1425 = vmatprep.subr.mxu0 0.0
    %1426 = vmatpush1.xpose.msra.mxu0 0.0
    %1427 = vmatprep.subr.mxu0 0.0
    %1428 = vmatpush1.xpose.msra.mxu0 0.0
    %1429 = vmatprep.subr.mxu0 0.0
    %1430 = vmatpush1.xpose.msra.mxu0 0.0
    %1431 = vmatprep.subr.mxu0 0.0
    %1432 = vmatpush1.xpose.msra.mxu0 0.0
    %1433 = vmatprep.subr.mxu0 0.0
    %1434 = vmatpush1.xpose.msra.mxu0 0.0
    %1435 = vmatprep.subr.mxu0 0.0
    %1436 = vmatpush1.xpose.msra.mxu0 0.0
    %1437 = vmatprep.subr.mxu0 0.0
    %1438 = vmatpush1.xpose.msra.mxu0 0.0
    %1439 = vmatprep.subr.mxu0 0.0
    %1440 = vmatpush1.xpose.msra.mxu0 0.0
    %1441 = vmatprep.subr.mxu0 0.0
    %1442 = vmatpush1.xpose.msra.mxu0 0.0
    %1443 = vmatprep.subr.mxu0 0.0
    %1444 = vmatpush1.xpose.msra.mxu0 0.0
    %1445 = vmatprep.subr.mxu0 0.0
    %1446 = vmatpush1.xpose.msra.mxu0 0.0
    %1447 = vmatprep.subr.mxu0 0.0
    %1448 = vmatpush1.xpose.msra.mxu0 %v1415
    %1449 = vmatprep.subr.mxu0 0.0
    %1450 = vmatpush2.xpose.msra.mxu0 0.0
    %1451 = vmatprep.subr.mxu0 0.0
    %1452 = vmatpush2.xpose.msra.mxu0 0.0
    %1453 = vmatprep.subr.mxu0 0.0
    %1454 = vmatpush2.xpose.msra.mxu0 0.0
    %1455 = vmatprep.subr.mxu0 0.0
    %1456 = vmatpush2.xpose.msra.mxu0 0.0
    %1457 = vmatprep.subr.mxu0 0.0
    %1458 = vmatpush2.xpose.msra.mxu0 0.0
    %1459 = vmatprep.subr.mxu0 0.0
    %1460 = vmatpush2.xpose.msra.mxu0 0.0
    %1461 = vmatprep.subr.mxu0 0.0
    %1462 = vmatpush2.xpose.msra.mxu0 0.0
    %1463 = vmatprep.subr.mxu0 0.0
    %1464 = vmatpush2.xpose.msra.mxu0 0.0
    %1465 = vmatprep.subr.mxu0 0.0
    %1466 = vmatpush2.xpose.msra.mxu0 0.0
    %1467 = vmatprep.subr.mxu0 0.0
    %1468 = vmatpush2.xpose.msra.mxu0 0.0
    %1469 = vmatprep.subr.mxu0 0.0
    %1470 = vmatpush2.xpose.msra.mxu0 0.0
    %1471 = vmatprep.subr.mxu0 0.0
    %1472 = vmatpush2.xpose.msra.mxu0 0.0
    %1473 = vmatprep.subr.mxu0 0.0
    %1474 = vmatpush2.xpose.msra.mxu0 0.0
    %1475 = vmatprep.subr.mxu0 0.0
    %1476 = vmatpush2.xpose.msra.mxu0 0.0
    %1477 = vmatprep.subr.mxu0 0.0
    %1478 = vmatpush2.xpose.msra.mxu0 0.0
    %1479 = vmatprep.subr.mxu0 0.0
    %1480 = vmatpush2.xpose.msra.mxu0 0.0
    %1481 = vmatprep.mubr.f32.mxu0 0.0
    %1482 = vmatmul.mubr.f32.gmra.mxu0 %v1413
    %v1483 = vpop.f32.mrf.mxu0
    %v1484 = vadd.f32 0.0, %v1483
    %v1485 = vpop.f32.mrf.mxu0
    %1486 = vdwg.mxu0
    %v1487 = vmul.f32 %v1484, 0.35355338
    %v1488 = vadd.f32 %v1487, %v986
    %v1489 = vsel %vm219, %v1488, -inf
    %1490 = vmax.xlane.f32.xlu0 %v1489
    %v1491 = vpop.xlane.xlu0 %1490
    %v1492 = vsub.f32 %v1488, %v1491
    %v1493 = vmul.f32 %v1492, 1.442695
    %v1494 = vpow.pop %v1493
    %v1495 = vsel %vm219, %v1494, 0.0
    %1496 = vadd.xlane.f32.xlu0 %v1495
    %v1497 = vpop.xlane.xlu0 %1496
    %v1498 = vrcp.pop %v1497
    %v1499 = vmul.f32 %v1494, %v1498
    %1500 = vrot.lane.b32.xlu0 %v213, 40
    %v1501 = vpop.permute.xlu0 %1500
    %v1504 = vsel %vm219, %v1499, 0
    %1506 = vmatprep.subr.mxu0 0.0
    %1507 = vmatpush1.msra.mxu0 0.0
    %1508 = vmatprep.subr.mxu0 0.0
    %1509 = vmatpush1.msra.mxu0 0.0
    %1510 = vmatprep.subr.mxu0 0.0
    %1511 = vmatpush1.msra.mxu0 0.0
    %1512 = vmatprep.subr.mxu0 0.0
    %1513 = vmatpush1.msra.mxu0 0.0
    %1514 = vmatprep.subr.mxu0 0.0
    %1515 = vmatpush1.msra.mxu0 0.0
    %1516 = vmatprep.subr.mxu0 0.0
    %1517 = vmatpush1.msra.mxu0 0.0
    %1518 = vmatprep.subr.mxu0 0.0
    %1519 = vmatpush1.msra.mxu0 0.0
    %1520 = vmatprep.subr.mxu0 0.0
    %1521 = vmatpush1.msra.mxu0 0.0
    %1522 = vmatprep.subr.mxu0 0.0
    %1523 = vmatpush1.msra.mxu0 0.0
    %1524 = vmatprep.subr.mxu0 0.0
    %1525 = vmatpush1.msra.mxu0 0.0
    %1526 = vmatprep.subr.mxu0 0.0
    %1527 = vmatpush1.msra.mxu0 0.0
    %1528 = vmatprep.subr.mxu0 0.0
    %1529 = vmatpush1.msra.mxu0 0.0
    %1530 = vmatprep.subr.mxu0 0.0
    %1531 = vmatpush1.msra.mxu0 0.0
    %1532 = vmatprep.subr.mxu0 0.0
    %1533 = vmatpush1.msra.mxu0 0.0
    %1534 = vmatprep.subr.mxu0 0.0
    %1535 = vmatpush1.msra.mxu0 0.0
    %1536 = vmatprep.subr.mxu0 0.0
    %1537 = vmatpush1.msra.mxu0 %v1501
    %1538 = vmatprep.subr.mxu0 0.0
    %1539 = vmatpush2.msra.mxu0 0.0
    %1540 = vmatprep.subr.mxu0 0.0
    %1541 = vmatpush2.msra.mxu0 0.0
    %1542 = vmatprep.subr.mxu0 0.0
    %1543 = vmatpush2.msra.mxu0 0.0
    %1544 = vmatprep.subr.mxu0 0.0
    %1545 = vmatpush2.msra.mxu0 0.0
    %1546 = vmatprep.subr.mxu0 0.0
    %1547 = vmatpush2.msra.mxu0 0.0
    %1548 = vmatprep.subr.mxu0 0.0
    %1549 = vmatpush2.msra.mxu0 0.0
    %1550 = vmatprep.subr.mxu0 0.0
    %1551 = vmatpush2.msra.mxu0 0.0
    %1552 = vmatprep.subr.mxu0 0.0
    %1553 = vmatpush2.msra.mxu0 0.0
    %1554 = vmatprep.subr.mxu0 0.0
    %1555 = vmatpush2.msra.mxu0 0.0
    %1556 = vmatprep.subr.mxu0 0.0
    %1557 = vmatpush2.msra.mxu0 0.0
    %1558 = vmatprep.subr.mxu0 0.0
    %1559 = vmatpush2.msra.mxu0 0.0
    %1560 = vmatprep.subr.mxu0 0.0
    %1561 = vmatpush2.msra.mxu0 0.0
    %1562 = vmatprep.subr.mxu0 0.0
    %1563 = vmatpush2.msra.mxu0 0.0
    %1564 = vmatprep.subr.mxu0 0.0
    %1565 = vmatpush2.msra.mxu0 0.0
    %1566 = vmatprep.subr.mxu0 0.0
    %1567 = vmatpush2.msra.mxu0 0.0
    %1568 = vmatprep.subr.mxu0 0.0
    %1569 = vmatpush2.msra.mxu0 0.0
    %1570 = vmatprep.mubr.f32.mxu0 0.0
    %1571 = vmatmul.mubr.f32.gmra.mxu0 %v1504
    %v1572 = vpop.f32.mrf.mxu0
    %v1573 = vadd.f32 0.0, %v1572
    %v1574 = vpop.f32.mrf.mxu0
    %1575 = vdwg.mxu0
    %1577 = vrot.lane.b32.xlu0 %v1239, 8
    %v1578 = vpop.permute.xlu0 %1577
    %1581 = vrot.lane.b32.xlu0 %v1406, 16
    %v1582 = vpop.permute.xlu0 %1581
    %1585 = vrot.lane.b32.xlu0 %v1573, 24
    %v1586 = vpop.permute.xlu0 %1585
    %v1588 = vsel %vm219, %v1072, %v1578
    %v1589 = vsel %vm901, %v1588, %v1582
    %v1590 = vsel %vm903, %v1589, %v1586
    %v1591 = vld [vmem:[%s5] sm:$0xff]
    %v1592 = vld [vmem:[%s5 + $0x8] sm:$0xff]
    %v1593 = vld [vmem:[%s5 + $0x10] sm:$0xff]
    %v1594 = vld [vmem:[%s5 + $0x18] sm:$0xff]
    %v1595 = vlaneseq
    %v1596 = vshrl.u32 %v1595, 7
    %v1597 = vsub.s32 1, %v1596
    %v1598 = vrot.slane %v71, %v1597
    %v1600 = vsel %vm72, %v904, 0
    %v1603 = vsel %vm72, %v1590, 0
    %1605 = vmatprep.subr.mxu0 0.0
    %1606 = vmatpush1.msra.mxu0 0.0
    %1607 = vmatprep.subr.mxu0 0.0
    %1608 = vmatpush1.msra.mxu0 0.0
    %1609 = vmatprep.subr.mxu0 0.0
    %1610 = vmatpush1.msra.mxu0 0.0
    %1611 = vmatprep.subr.mxu0 0.0
    %1612 = vmatpush1.msra.mxu0 0.0
    %1613 = vmatprep.subr.mxu0 0.0
    %1614 = vmatpush1.msra.mxu0 0.0
    %1615 = vmatprep.subr.mxu0 0.0
    %1616 = vmatpush1.msra.mxu0 0.0
    %1617 = vmatprep.subr.mxu0 0.0
    %1618 = vmatpush1.msra.mxu0 0.0
    %1619 = vmatprep.subr.mxu0 0.0
    %1620 = vmatpush1.msra.mxu0 0.0
    %1621 = vmatprep.subr.mxu0 0.0
    %1622 = vmatpush1.msra.mxu0 0.0
    %1623 = vmatprep.subr.mxu0 0.0
    %1624 = vmatpush1.msra.mxu0 0.0
    %1625 = vmatprep.subr.mxu0 0.0
    %1626 = vmatpush1.msra.mxu0 0.0
    %1627 = vmatprep.subr.mxu0 0.0
    %1628 = vmatpush1.msra.mxu0 0.0
    %1629 = vmatprep.subr.mxu0 0.0
    %1630 = vmatpush1.msra.mxu0 %v1594
    %1631 = vmatprep.subr.mxu0 0.0
    %1632 = vmatpush1.msra.mxu0 %v1593
    %1633 = vmatprep.subr.mxu0 0.0
    %1634 = vmatpush1.msra.mxu0 %v1592
    %1635 = vmatprep.subr.mxu0 0.0
    %1636 = vmatpush1.msra.mxu0 %v1591
    %1637 = vmatprep.subr.mxu0 0.0
    %1638 = vmatpush2.msra.mxu0 0.0
    %1639 = vmatprep.subr.mxu0 0.0
    %1640 = vmatpush2.msra.mxu0 0.0
    %1641 = vmatprep.subr.mxu0 0.0
    %1642 = vmatpush2.msra.mxu0 0.0
    %1643 = vmatprep.subr.mxu0 0.0
    %1644 = vmatpush2.msra.mxu0 0.0
    %1645 = vmatprep.subr.mxu0 0.0
    %1646 = vmatpush2.msra.mxu0 0.0
    %1647 = vmatprep.subr.mxu0 0.0
    %1648 = vmatpush2.msra.mxu0 0.0
    %1649 = vmatprep.subr.mxu0 0.0
    %1650 = vmatpush2.msra.mxu0 0.0
    %1651 = vmatprep.subr.mxu0 0.0
    %1652 = vmatpush2.msra.mxu0 0.0
    %1653 = vmatprep.subr.mxu0 0.0
    %1654 = vmatpush2.msra.mxu0 0.0
    %1655 = vmatprep.subr.mxu0 0.0
    %1656 = vmatpush2.msra.mxu0 0.0
    %1657 = vmatprep.subr.mxu0 0.0
    %1658 = vmatpush2.msra.mxu0 0.0
    %1659 = vmatprep.subr.mxu0 0.0
    %1660 = vmatpush2.msra.mxu0 0.0
    %1661 = vmatprep.subr.mxu0 0.0
    %1662 = vmatpush2.msra.mxu0 0.0
    %1663 = vmatprep.subr.mxu0 0.0
    %1664 = vmatpush2.msra.mxu0 0.0
    %1665 = vmatprep.subr.mxu0 0.0
    %1666 = vmatpush2.msra.mxu0 0.0
    %1667 = vmatprep.subr.mxu0 0.0
    %1668 = vmatpush2.msra.mxu0 0.0
    %1669 = vmatprep.mubr.f32.mxu0 0.0
    %1670 = vmatmul.mubr.f32.gmra.mxu0 %v1600
    %v1671 = vpop.f32.mrf.mxu0
    %v1672 = vadd.f32 %v1598, %v1671
    %v1673 = vpop.f32.mrf.mxu0
    %1674 = vmatprep.mubr.f32.mxu0 0.0
    %1675 = vmatmul.mubr.f32.gmra.mxu0 %v1603
    %v1676 = vpop.f32.mrf.mxu0
    %v1677 = vadd.f32 %v1598, %v1676
    %v1678 = vpop.f32.mrf.mxu0
    %1679 = vdwg.mxu0
    %v1680 = vadd.f32 %v67, %v1672
    %v1681 = vadd.f32 %v68, %v1677
    %v1682 = vsel %vm72, %v1680, 0.0
    %1683 = vadd.xlane.f32.xlu0 %v1682
    %v1684 = vpop.xlane.xlu0 %1683
    %v1685 = vsel %vm72, %v1681, 0.0
    %1686 = vadd.xlane.f32.xlu0 %v1685
    %v1687 = vpop.xlane.xlu0 %1686
    %v1688 = vmul.f32 %v1684, %v79
    %v1689 = vmul.f32 %v1687, %v79
    %v1690 = vsub.f32 %v1680, %v1688
    %v1691 = vsub.f32 %v1681, %v1689
    %v1692 = vmul.f32 %v1690, %v1690
    %v1693 = vmul.f32 %v1691, %v1691
    %v1694 = vsel %vm72, %v1692, 0.0
    %1695 = vadd.xlane.f32.xlu0 %v1694
    %v1696 = vpop.xlane.xlu0 %1695
    %v1697 = vsel %vm72, %v1693, 0.0
    %1698 = vadd.xlane.f32.xlu0 %v1697
    %v1699 = vpop.xlane.xlu0 %1698
    %v1700 = vmul.f32 %v1696, %v92
    %v1701 = vmul.f32 %v1699, %v92
    %v1702 = vrsqrt.pop %v1700
    %v1703 = vmul.f32 %v1700, %v1702
    %vm1704 = vcmp.eq.f32.partialorder %v1700, inf
    %v1705 = vsel %vm1704, %v1700, %v1703
    %vm1706 = vcmp.eq.f32.partialorder %v1700, 0.0
    %v1707 = vand.u32 %v1700, 2147483648
    %v1708 = vsel %vm1706, %v1707, %v1705
    %v1709 = vrsqrt.pop %v1701
    %v1710 = vmul.f32 %v1701, %v1709
    %vm1711 = vcmp.eq.f32.partialorder %v1701, inf
    %v1712 = vsel %vm1711, %v1701, %v1710
    %vm1713 = vcmp.eq.f32.partialorder %v1701, 0.0
    %v1714 = vand.u32 %v1701, 2147483648
    %v1715 = vsel %vm1713, %v1714, %v1712
    %v1716 = vlaneseq
    %v1717 = vshrl.u32 %v1716, 7
    %v1718 = vsub.s32 2, %v1717
    %v1719 = vrot.slane %v70, %v1718
    %v1720 = vmul.f32 %v1719, %v1690
    %v1721 = vmul.f32 %v1719, %v1691
    %v1722 = vadd.f32 %v1708, 1e-06
    %v1723 = vadd.f32 %v1715, 1e-06
    %v1724 = vrcp.pop %v1722
    %v1725 = vmul.f32 %v1720, %v1724
    %v1726 = vrcp.pop %v1723
    %v1727 = vmul.f32 %v1721, %v1726
    %v1728 = vlaneseq
    %v1729 = vshrl.u32 %v1728, 7
    %v1730 = vsub.s32 3, %v1729
    %v1731 = vrot.slane %v70, %v1730
    %v1732 = vadd.f32 %v1725, %v1731
    %v1733 = vadd.f32 %v1727, %v1731
    %v1734 = vld [vmem:[%s6] sm:$0xff]
    %v1735 = vld [vmem:[%s6 + $0x8] sm:$0xff]
    %v1736 = vld [vmem:[%s6 + $0x10] sm:$0xff]
    %v1737 = vld [vmem:[%s6 + $0x18] sm:$0xff]
    %v1738 = vlaneseq
    %v1739 = vshrl.u32 %v1738, 7
    %v1740 = vsub.s32 2, %v1739
    %v1741 = vrot.slane %v71, %v1740
    %v1743 = vsel %vm72, %v1732, 0
    %v1746 = vsel %vm72, %v1733, 0
    %1748 = vmatprep.subr.mxu0 0.0
    %1749 = vmatpush1.msra.mxu0 0.0
    %1750 = vmatprep.subr.mxu0 0.0
    %1751 = vmatpush1.msra.mxu0 0.0
    %1752 = vmatprep.subr.mxu0 0.0
    %1753 = vmatpush1.msra.mxu0 0.0
    %1754 = vmatprep.subr.mxu0 0.0
    %1755 = vmatpush1.msra.mxu0 0.0
    %1756 = vmatprep.subr.mxu0 0.0
    %1757 = vmatpush1.msra.mxu0 0.0
    %1758 = vmatprep.subr.mxu0 0.0
    %1759 = vmatpush1.msra.mxu0 0.0
    %1760 = vmatprep.subr.mxu0 0.0
    %1761 = vmatpush1.msra.mxu0 0.0
    %1762 = vmatprep.subr.mxu0 0.0
    %1763 = vmatpush1.msra.mxu0 0.0
    %1764 = vmatprep.subr.mxu0 0.0
    %1765 = vmatpush1.msra.mxu0 0.0
    %1766 = vmatprep.subr.mxu0 0.0
    %1767 = vmatpush1.msra.mxu0 0.0
    %1768 = vmatprep.subr.mxu0 0.0
    %1769 = vmatpush1.msra.mxu0 0.0
    %1770 = vmatprep.subr.mxu0 0.0
    %1771 = vmatpush1.msra.mxu0 0.0
    %1772 = vmatprep.subr.mxu0 0.0
    %1773 = vmatpush1.msra.mxu0 %v1737
    %1774 = vmatprep.subr.mxu0 0.0
    %1775 = vmatpush1.msra.mxu0 %v1736
    %1776 = vmatprep.subr.mxu0 0.0
    %1777 = vmatpush1.msra.mxu0 %v1735
    %1778 = vmatprep.subr.mxu0 0.0
    %1779 = vmatpush1.msra.mxu0 %v1734
    %1780 = vmatprep.subr.mxu0 0.0
    %1781 = vmatpush2.msra.mxu0 0.0
    %1782 = vmatprep.subr.mxu0 0.0
    %1783 = vmatpush2.msra.mxu0 0.0
    %1784 = vmatprep.subr.mxu0 0.0
    %1785 = vmatpush2.msra.mxu0 0.0
    %1786 = vmatprep.subr.mxu0 0.0
    %1787 = vmatpush2.msra.mxu0 0.0
    %1788 = vmatprep.subr.mxu0 0.0
    %1789 = vmatpush2.msra.mxu0 0.0
    %1790 = vmatprep.subr.mxu0 0.0
    %1791 = vmatpush2.msra.mxu0 0.0
    %1792 = vmatprep.subr.mxu0 0.0
    %1793 = vmatpush2.msra.mxu0 0.0
    %1794 = vmatprep.subr.mxu0 0.0
    %1795 = vmatpush2.msra.mxu0 0.0
    %1796 = vmatprep.subr.mxu0 0.0
    %1797 = vmatpush2.msra.mxu0 0.0
    %1798 = vmatprep.subr.mxu0 0.0
    %1799 = vmatpush2.msra.mxu0 0.0
    %1800 = vmatprep.subr.mxu0 0.0
    %1801 = vmatpush2.msra.mxu0 0.0
    %1802 = vmatprep.subr.mxu0 0.0
    %1803 = vmatpush2.msra.mxu0 0.0
    %1804 = vmatprep.subr.mxu0 0.0
    %1805 = vmatpush2.msra.mxu0 0.0
    %1806 = vmatprep.subr.mxu0 0.0
    %1807 = vmatpush2.msra.mxu0 0.0
    %1808 = vmatprep.subr.mxu0 0.0
    %1809 = vmatpush2.msra.mxu0 0.0
    %1810 = vmatprep.subr.mxu0 0.0
    %1811 = vmatpush2.msra.mxu0 0.0
    %1812 = vmatprep.mubr.f32.mxu0 0.0
    %1813 = vmatmul.mubr.f32.gmra.mxu0 %v1743
    %v1814 = vpop.f32.mrf.mxu0
    %v1815 = vadd.f32 %v1741, %v1814
    %v1816 = vpop.f32.mrf.mxu0
    %1817 = vmatprep.mubr.f32.mxu0 0.0
    %1818 = vmatmul.mubr.f32.gmra.mxu0 %v1746
    %v1819 = vpop.f32.mrf.mxu0
    %v1820 = vadd.f32 %v1741, %v1819
    %v1821 = vpop.f32.mrf.mxu0
    %1822 = vdwg.mxu0
    %v1823 = vmax.f32 %v1815, 0.0
    %v1824 = vmax.f32 %v1820, 0.0
    %v1825 = vld [vmem:[%s7] sm:$0xff]
    %v1826 = vld [vmem:[%s7 + $0x8] sm:$0xff]
    %v1827 = vld [vmem:[%s7 + $0x10] sm:$0xff]
    %v1828 = vld [vmem:[%s7 + $0x18] sm:$0xff]
    %v1829 = vld [vmem:[%s7 + $0x20] sm:$0xff]
    %v1830 = vld [vmem:[%s7 + $0x28] sm:$0xff]
    %v1831 = vld [vmem:[%s7 + $0x30] sm:$0xff]
    %v1832 = vld [vmem:[%s7 + $0x38] sm:$0xff]
    %v1833 = vlaneseq
    %v1834 = vshrl.u32 %v1833, 7
    %v1835 = vsub.s32 3, %v1834
    %v1836 = vrot.slane %v71, %v1835
    %vm1837 = vcmask 523264
    %v1839 = vsel %vm1837, %v1823, 0
    %v1842 = vsel %vm1837, %v1824, 0
    %1844 = vmatprep.subr.mxu0 0.0
    %1845 = vmatpush1.msra.mxu0 0.0
    %1846 = vmatprep.subr.mxu0 0.0
    %1847 = vmatpush1.msra.mxu0 0.0
    %1848 = vmatprep.subr.mxu0 0.0
    %1849 = vmatpush1.msra.mxu0 0.0
    %1850 = vmatprep.subr.mxu0 0.0
    %1851 = vmatpush1.msra.mxu0 0.0
    %1852 = vmatprep.subr.mxu0 0.0
    %1853 = vmatpush1.msra.mxu0 0.0
    %1854 = vmatprep.subr.mxu0 0.0
    %1855 = vmatpush1.msra.mxu0 0.0
    %1856 = vmatprep.subr.mxu0 0.0
    %1857 = vmatpush1.msra.mxu0 0.0
    %1858 = vmatprep.subr.mxu0 0.0
    %1859 = vmatpush1.msra.mxu0 0.0
    %1860 = vmatprep.subr.mxu0 0.0
    %1861 = vmatpush1.msra.mxu0 %v1832
    %1862 = vmatprep.subr.mxu0 0.0
    %1863 = vmatpush1.msra.mxu0 %v1831
    %1864 = vmatprep.subr.mxu0 0.0
    %1865 = vmatpush1.msra.mxu0 %v1830
    %1866 = vmatprep.subr.mxu0 0.0
    %1867 = vmatpush1.msra.mxu0 %v1829
    %1868 = vmatprep.subr.mxu0 0.0
    %1869 = vmatpush1.msra.mxu0 %v1828
    %1870 = vmatprep.subr.mxu0 0.0
    %1871 = vmatpush1.msra.mxu0 %v1827
    %1872 = vmatprep.subr.mxu0 0.0
    %1873 = vmatpush1.msra.mxu0 %v1826
    %1874 = vmatprep.subr.mxu0 0.0
    %1875 = vmatpush1.msra.mxu0 %v1825
    %1876 = vmatprep.subr.mxu0 0.0
    %1877 = vmatpush2.msra.mxu0 0.0
    %1878 = vmatprep.subr.mxu0 0.0
    %1879 = vmatpush2.msra.mxu0 0.0
    %1880 = vmatprep.subr.mxu0 0.0
    %1881 = vmatpush2.msra.mxu0 0.0
    %1882 = vmatprep.subr.mxu0 0.0
    %1883 = vmatpush2.msra.mxu0 0.0
    %1884 = vmatprep.subr.mxu0 0.0
    %1885 = vmatpush2.msra.mxu0 0.0
    %1886 = vmatprep.subr.mxu0 0.0
    %1887 = vmatpush2.msra.mxu0 0.0
    %1888 = vmatprep.subr.mxu0 0.0
    %1889 = vmatpush2.msra.mxu0 0.0
    %1890 = vmatprep.subr.mxu0 0.0
    %1891 = vmatpush2.msra.mxu0 0.0
    %1892 = vmatprep.subr.mxu0 0.0
    %1893 = vmatpush2.msra.mxu0 0.0
    %1894 = vmatprep.subr.mxu0 0.0
    %1895 = vmatpush2.msra.mxu0 0.0
    %1896 = vmatprep.subr.mxu0 0.0
    %1897 = vmatpush2.msra.mxu0 0.0
    %1898 = vmatprep.subr.mxu0 0.0
    %1899 = vmatpush2.msra.mxu0 0.0
    %1900 = vmatprep.subr.mxu0 0.0
    %1901 = vmatpush2.msra.mxu0 0.0
    %1902 = vmatprep.subr.mxu0 0.0
    %1903 = vmatpush2.msra.mxu0 0.0
    %1904 = vmatprep.subr.mxu0 0.0
    %1905 = vmatpush2.msra.mxu0 0.0
    %1906 = vmatprep.subr.mxu0 0.0
    %1907 = vmatpush2.msra.mxu0 0.0
    %1908 = vmatprep.mubr.f32.mxu0 0.0
    %1909 = vmatmul.mubr.f32.gmra.mxu0 %v1839
    %v1910 = vpop.f32.mrf.mxu0
    %v1911 = vadd.f32 %v1836, %v1910
    %v1912 = vpop.f32.mrf.mxu0
    %1913 = vmatprep.mubr.f32.mxu0 0.0
    %1914 = vmatmul.mubr.f32.gmra.mxu0 %v1842
    %v1915 = vpop.f32.mrf.mxu0
    %v1916 = vadd.f32 %v1836, %v1915
    %v1917 = vpop.f32.mrf.mxu0
    %1918 = vdwg.mxu0
    %v1919 = vadd.f32 %v1680, %v1911
    %v1920 = vadd.f32 %v1681, %v1916
    %1921 = vst.msk [vmem:[#allocation8] sm:$0xff] %vm72, %v1919
    %1922 = vst.msk [vmem:[#allocation8 + $0x8] sm:$0xff] %vm72, %v1920
    // Predicated region
    $region46: #{tpu_custom_call.1} parent=1 // pred_check
      _
    $region47: #{tpu_custom_call.1} parent=1 // pred_check_branch
      %1924 = sbr.rel (0) target = $region49
    $region48: #{tpu_custom_call.1} parent=1 // pred_region
      %s1926 = ssub.s32 256, 256
      %1927 = vsyncadd [#allocation4], %s1926
      %s1928 = sshll.u32 [#allocation8], 4
      %s1929 = int_to_ptr.vmem [resolvable:$true] %s1928
      %1934 = dma.vmem_to_hbm [thread:$0]  %s1929, 256, %s8, [#allocation4], 128, 128, 8
    $region49: #{tpu_custom_call.1} parent=1 // pred_fallthru
      _
    // Predicated region
    $region50: #{tpu_custom_call.1} parent=1 // pred_check
      _
    $region51: #{tpu_custom_call.1} parent=1 // pred_check_branch
      %1936 = sbr.rel (0) target = $region53
    $region52: #{tpu_custom_call.1} parent=1 // pred_region
      %1937 = dma.done [#allocation4], 256
    $region53: #{tpu_custom_call.1} parent=1 // pred_fallthru
      _
    %1938 = vsyncpa [#allocation3], 1
    %1939 = vsyncpa [#allocation6], 1
    %1940 = vsyncpa [#allocation4], 1

</llo_original>
